<compile_context>
chip_gen: v6e
topology: v6e:2x2x1
jax: 0.10.0
libtpu: 0.0.40
codegen_flags: <defaults>
</compile_context>

<pallas_src>
import functools

import numpy as np
import jax
import jax.numpy as jnp
from jax.experimental import pallas as pl
from jax.experimental.pallas import tpu as pltpu


def _tap_masks(H, W, KH, KW, pad):
    """Per-tap 0/1 masks over the flattened H*W axis: 1 where the shifted input
    index stays inside the image (i.e. the tap does not read the zero halo)."""
    ys = np.arange(H)[:, None]
    xs = np.arange(W)[None, :]
    m = np.zeros((KH * KW, 1, H * W), np.float32)
    for kh in range(KH):
        for kw in range(KW):
            oy, ox = kh - pad, kw - pad
            valid = ((ys + oy >= 0) & (ys + oy < H) &
                     (xs + ox >= 0) & (xs + ox < W))
            m[kh * KW + kw, 0, :] = valid.reshape(-1).astype(np.float32)
    return m


def _dw_conv_same(x, w_ref, m_ref, *, W, KH, KW, pad):
    """Depthwise 'same' conv on a lane-flattened spatial axis.

    x:      (1, cb, HW) f32   channel block on sublanes, H*W on lanes
    w_ref:  (KH*KW, cb, 1)    per-channel tap weights (f32)
    m_ref:  (KH*KW, 1, HW)    halo masks (f32, 0 where the tap reads padding)
    """
    HW = x.shape[-1]
    acc = None
    for kh in range(KH):
        for kw in range(KW):
            oy, ox = kh - pad, kw - pad
            t = oy * W + ox                      # flat-index shift of this tap
            tap = kh * KW + kw
            # shifted[j] = x[j + t]  (wrapped values are masked to zero below)
            shifted = x if t == 0 else pltpu.roll(x, shift=(-t) % HW, axis=2)
            if oy == 0 and ox == 0:
                contrib = shifted * w_ref[tap]                    # (1, cb, HW)
            else:
                contrib = shifted * m_ref[tap] * w_ref[tap]       # (1, cb, HW)
            acc = contrib if acc is None else acc + contrib
    return acc


def _conv_stats_kernel(x_ref, w_ref, m_ref, stats_ref, *, W, KH, KW, pad):
    """Pass 1: depthwise conv fused with per-(image, channel) BN partials."""
    x = x_ref[...].astype(jnp.float32)                            # (1, cb, HW)
    y = _dw_conv_same(x, w_ref, m_ref, W=W, KH=KH, KW=KW, pad=pad)
    inv_hw = 1.0 / y.shape[-1]
    mean = jnp.sum(y, axis=2, keepdims=True) * inv_hw             # (1, cb, 1)
    d = y - mean
    m2 = jnp.sum(d * d, axis=2, keepdims=True)                    # (1, cb, 1)
    stats_ref[:, :, 0:1] = mean
    stats_ref[:, :, 1:2] = m2


def _conv_bn_relu_kernel(x_ref, w_ref, m_ref, scale_ref, shift_ref, o_ref,
                         *, W, KH, KW, pad):
    """Pass 2: recompute conv, apply precomputed BN scale/shift + ReLU."""
    x = x_ref[...].astype(jnp.float32)                            # (1, cb, HW)
    y = _dw_conv_same(x, w_ref, m_ref, W=W, KH=KH, KW=KW, pad=pad)
    out = jnp.maximum(y * scale_ref[...] + shift_ref[...], 0.0)
    o_ref[...] = out.astype(o_ref.dtype)


def basic_sep_conv(x, weight, gamma, beta, *, padding=1, eps=1e-5, c_block=None):
    """Fused depthwise conv (groups=C, bias=False) + BatchNorm2d (training
    batch stats) + ReLU.

    x: (N, C, H, W); weight: (C, 1, KH, KW).  Fast path covers BasicSepConv's
    stride=1, dilation=1, 'same' padding (2*padding == kernel_size-1), e.g.
    kernel_size=3, padding=1.
    """
    N, C, H, W = x.shape
    Cw, one, KH, KW = weight.shape
    assert Cw == C and one == 1, "expected depthwise weight of shape (C,1,KH,KW)"
    assert KH == KW and 2 * padding == KH - 1, (
        "fast path supports stride=1, dilation=1 and 'same' padding only")
    # TODO(synk): general stride/dilation/valid padding would need a halo-aware
    # row-blocked BlockSpec instead of the flattened-spatial roll trick.

    HW = H * W
    cb = C if c_block is None else c_block
    assert C % cb == 0 and (cb == C or cb % 8 == 0)

    # Free reshapes only: NCHW already has channels ahead of spatial, so
    # flattening (H, W) -> H*W puts a lane-dense axis last with no transpose
    # and no zero-padding pass through HBM.
    x_flat = x.reshape(N, C, HW)
    w_k = jnp.transpose(weight.reshape(C, KH * KW))[:, :, None].astype(jnp.float32)
    masks = jnp.asarray(_tap_masks(H, W, KH, KW, padding))        # (KH*KW,1,HW)

    grid = (N, C // cb)
    cparams = pltpu.CompilerParams(
        dimension_semantics=("parallel", "parallel"),  # v7x: shard over 2 TCs
        vmem_limit_bytes=32 * 1024 * 1024)

    x_spec = pl.BlockSpec((1, cb, HW), lambda n, c: (n, c, 0))
    w_spec = pl.BlockSpec((KH * KW, cb, 1), lambda n, c: (0, c, 0))
    m_spec = pl.BlockSpec((KH * KW, 1, HW), lambda n, c: (0, 0, 0))

    # ---- pass 1: conv + per-(image, channel) mean / M2 partials ------------
    stats = pl.pallas_call(
        functools.partial(_conv_stats_kernel, W=W, KH=KH, KW=KW, pad=padding),
        out_shape=jax.ShapeDtypeStruct((N, C, 2), jnp.float32),
        grid=grid,
        in_specs=[x_spec, w_spec, m_spec],
        out_specs=pl.BlockSpec((1, cb, 2), lambda n, c: (n, c, 0)),
        compiler_params=cparams,
    )(x_flat, w_k, masks)

    # ---- tiny cross-block combine (Chan et al.): numerically safe ----------
    mean_b = stats[:, :, 0]                            # (N, C) per-image means
    m2_b = stats[:, :, 1]                              # (N, C) per-image M2
    mean = jnp.mean(mean_b, axis=0)                    # (C,)
    m2 = jnp.sum(m2_b, axis=0) + HW * jnp.sum((mean_b - mean[None, :]) ** 2, axis=0)
    var = m2 / (N * HW)                                # biased, as BN training uses
    inv_std = jax.lax.rsqrt(var + eps)
    scale = (gamma.astype(jnp.float32) * inv_std)[:, None]                 # (C,1)
    shift = (beta.astype(jnp.float32)[:, None] - mean[:, None] * scale)    # (C,1)
    # TODO(synk): running_mean/running_var buffer updates (momentum=0.01) are a
    # training-time side effect of nn.BatchNorm2d and are not produced here.

    # ---- pass 2: recompute cheap conv, fused normalize + affine + ReLU -----
    out_flat = pl.pallas_call(
        functools.partial(_conv_bn_relu_kernel, W=W, KH=KH, KW=KW, pad=padding),
        out_shape=jax.ShapeDtypeStruct((N, C, HW), x.dtype),
        grid=grid,
        in_specs=[x_spec, w_spec, m_spec,
                  pl.BlockSpec((cb, 1), lambda n, c: (c, 0)),
                  pl.BlockSpec((cb, 1), lambda n, c: (c, 0))],
        out_specs=pl.BlockSpec((1, cb, HW), lambda n, c: (n, c, 0)),
        compiler_params=cparams,
    )(x_flat, w_k, masks, scale, shift)

    return out_flat.reshape(N, C, H, W)                # free reshape back to NCHW


def _reference(x, weight, gamma, beta, padding, eps):
    """Pure-JAX reference: depthwise conv + training-mode BN + ReLU."""
    C = x.shape[1]
    y = jax.lax.conv_general_dilated(
        x, weight, window_strides=(1, 1),
        padding=((padding, padding), (padding, padding)),
        dimension_numbers=("NCHW", "OIHW", "NCHW"),
        feature_group_count=C)
    mean = jnp.mean(y, axis=(0, 2, 3), keepdims=True)
    var = jnp.mean((y - mean) ** 2, axis=(0, 2, 3), keepdims=True)
    yn = (y - mean) * jax.lax.rsqrt(var + eps)
    yn = yn * gamma[None, :, None, None] + beta[None, :, None, None]
    return jnp.maximum(yn, 0.0)


if __name__ == "__main__":
    # BasicSepConv(in_planes=4, kernel_size=3, stride=1, padding=1, relu=True,
    #              bn=True, bias=False)
    N, C, H, W = 2, 4, 16, 16
    KH = KW = 3

    key = jax.random.PRNGKey(0)
    kx, kw_key = jax.random.split(key)

    x = jax.random.normal(kx, (N, C, H, W), dtype=jnp.float32)
    fan_in = 1 * KH * KW
    bound = 1.0 / (fan_in ** 0.5)
    weight = jax.random.uniform(kw_key, (C, 1, KH, KW), jnp.float32,
                                minval=-bound, maxval=bound)
    gamma = jnp.ones((C,), jnp.float32)      # BatchNorm2d default init
    beta = jnp.zeros((C,), jnp.float32)

    fn = jax.jit(functools.partial(basic_sep_conv, padding=1, eps=1e-5))
    out = fn(x, weight, gamma, beta)
    jax.block_until_ready(out)
    assert out.shape == (N, C, H, W)

    ref = _reference(x, weight, gamma, beta, 1, 1e-5)
    err = float(jnp.max(jnp.abs(out - ref)))
    if err > 1e-3:
        raise AssertionError(f"mismatch vs reference: max abs err {err:.3e}")
    print("KERNEL_OK")
</pallas_src>

<mosaic_0001>
module attributes {stable_mosaic.version = 11 : i64} {
  func.func @_conv_bn_relu_kernel(%arg0: i32, %arg1: i32, %arg2: memref<1x4x256xf32, #tpu.memory_space<vmem>>, %arg3: memref<9x4x1xf32, #tpu.memory_space<vmem>>, %arg4: memref<9x1x256xf32, #tpu.memory_space<vmem>>, %arg5: memref<4x1xf32, #tpu.memory_space<vmem>>, %arg6: memref<4x1xf32, #tpu.memory_space<vmem>>, %arg7: memref<1x4x256xf32, #tpu.memory_space<vmem>>) attributes {dimension_semantics = [#tpu.dimension_semantics<parallel>, #tpu.dimension_semantics<parallel>], iteration_bounds = array<i64: 2, 1>, scalar_prefetch = 0 : i64, scratch_operands = 0 : i64, tpu.core_type = #tpu.core_type<tc>, window_params = [{transform_indices = @transform_0, window_bounds = array<i64: 1, 4, 256>}, {transform_indices = @transform_1, window_bounds = array<i64: 9, 4, 1>}, {pipeline_mode = #tpu.pipeline_mode<synchronous>, transform_indices = @transform_2, window_bounds = array<i64: 9, 1, 256>}, {transform_indices = @transform_3, window_bounds = array<i64: 4, 1>}, {transform_indices = @transform_4, window_bounds = array<i64: 4, 1>}, {transform_indices = @transform_5, window_bounds = array<i64: 1, 4, 256>}]} {
    %c0 = arith.constant 0 : index
    %c0_0 = arith.constant 0 : index
    %c0_1 = arith.constant 0 : index
    %0 = vector.load %arg2[%c0, %c0_0, %c0_1] : memref<1x4x256xf32, #tpu.memory_space<vmem>>, vector<1x4x256xf32>
    %c17_i32 = arith.constant 17 : i32
    %1 = tpu.dynamic_rotate %0 by %c17_i32 dim 2 : vector<1x4x256xf32>, i32 -> vector<1x4x256xf32>
    %c0_2 = arith.constant 0 : index
    %c0_3 = arith.constant 0 : index
    %c0_4 = arith.constant 0 : index
    %2 = vector.load %arg4[%c0_2, %c0_3, %c0_4] : memref<9x1x256xf32, #tpu.memory_space<vmem>>, vector<1x1x256xf32>
    %3 = vector.shape_cast %2 : vector<1x1x256xf32> to vector<1x256xf32>
    %4 = vector.shape_cast %3 : vector<1x256xf32> to vector<1x1x256xf32>
    %5 = vector.broadcast %4 : vector<1x1x256xf32> to vector<1x4x256xf32>
    %6 = arith.mulf %1, %5 : vector<1x4x256xf32>
    %c0_5 = arith.constant 0 : index
    %c0_6 = arith.constant 0 : index
    %c0_7 = arith.constant 0 : index
    %7 = vector.load %arg3[%c0_5, %c0_6, %c0_7] : memref<9x4x1xf32, #tpu.memory_space<vmem>>, vector<1x4x1xf32>
    %8 = vector.shape_cast %7 : vector<1x4x1xf32> to vector<4x1xf32>
    %9 = vector.shape_cast %8 : vector<4x1xf32> to vector<1x4x1xf32>
    %10 = vector.broadcast %9 : vector<1x4x1xf32> to vector<1x4x256xf32>
    %11 = arith.mulf %6, %10 : vector<1x4x256xf32>
    %c16_i32 = arith.constant 16 : i32
    %12 = tpu.dynamic_rotate %0 by %c16_i32 dim 2 : vector<1x4x256xf32>, i32 -> vector<1x4x256xf32>
    %c1 = arith.constant 1 : index
    %c0_8 = arith.constant 0 : index
    %c0_9 = arith.constant 0 : index
    %13 = vector.load %arg4[%c1, %c0_8, %c0_9] : memref<9x1x256xf32, #tpu.memory_space<vmem>>, vector<1x1x256xf32>
    %14 = vector.shape_cast %13 : vector<1x1x256xf32> to vector<1x256xf32>
    %15 = vector.shape_cast %14 : vector<1x256xf32> to vector<1x1x256xf32>
    %16 = vector.broadcast %15 : vector<1x1x256xf32> to vector<1x4x256xf32>
    %17 = arith.mulf %12, %16 : vector<1x4x256xf32>
    %c1_10 = arith.constant 1 : index
    %c0_11 = arith.constant 0 : index
    %c0_12 = arith.constant 0 : index
    %18 = vector.load %arg3[%c1_10, %c0_11, %c0_12] : memref<9x4x1xf32, #tpu.memory_space<vmem>>, vector<1x4x1xf32>
    %19 = vector.shape_cast %18 : vector<1x4x1xf32> to vector<4x1xf32>
    %20 = vector.shape_cast %19 : vector<4x1xf32> to vector<1x4x1xf32>
    %21 = vector.broadcast %20 : vector<1x4x1xf32> to vector<1x4x256xf32>
    %22 = arith.mulf %17, %21 : vector<1x4x256xf32>
    %23 = arith.addf %11, %22 : vector<1x4x256xf32>
    %c15_i32 = arith.constant 15 : i32
    %24 = tpu.dynamic_rotate %0 by %c15_i32 dim 2 : vector<1x4x256xf32>, i32 -> vector<1x4x256xf32>
    %c2 = arith.constant 2 : index
    %c0_13 = arith.constant 0 : index
    %c0_14 = arith.constant 0 : index
    %25 = vector.load %arg4[%c2, %c0_13, %c0_14] : memref<9x1x256xf32, #tpu.memory_space<vmem>>, vector<1x1x256xf32>
    %26 = vector.shape_cast %25 : vector<1x1x256xf32> to vector<1x256xf32>
    %27 = vector.shape_cast %26 : vector<1x256xf32> to vector<1x1x256xf32>
    %28 = vector.broadcast %27 : vector<1x1x256xf32> to vector<1x4x256xf32>
    %29 = arith.mulf %24, %28 : vector<1x4x256xf32>
    %c2_15 = arith.constant 2 : index
    %c0_16 = arith.constant 0 : index
    %c0_17 = arith.constant 0 : index
    %30 = vector.load %arg3[%c2_15, %c0_16, %c0_17] : memref<9x4x1xf32, #tpu.memory_space<vmem>>, vector<1x4x1xf32>
    %31 = vector.shape_cast %30 : vector<1x4x1xf32> to vector<4x1xf32>
    %32 = vector.shape_cast %31 : vector<4x1xf32> to vector<1x4x1xf32>
    %33 = vector.broadcast %32 : vector<1x4x1xf32> to vector<1x4x256xf32>
    %34 = arith.mulf %29, %33 : vector<1x4x256xf32>
    %35 = arith.addf %23, %34 : vector<1x4x256xf32>
    %c1_i32 = arith.constant 1 : i32
    %36 = tpu.dynamic_rotate %0 by %c1_i32 dim 2 : vector<1x4x256xf32>, i32 -> vector<1x4x256xf32>
    %c3 = arith.constant 3 : index
    %c0_18 = arith.constant 0 : index
    %c0_19 = arith.constant 0 : index
    %37 = vector.load %arg4[%c3, %c0_18, %c0_19] : memref<9x1x256xf32, #tpu.memory_space<vmem>>, vector<1x1x256xf32>
    %38 = vector.shape_cast %37 : vector<1x1x256xf32> to vector<1x256xf32>
    %39 = vector.shape_cast %38 : vector<1x256xf32> to vector<1x1x256xf32>
    %40 = vector.broadcast %39 : vector<1x1x256xf32> to vector<1x4x256xf32>
    %41 = arith.mulf %36, %40 : vector<1x4x256xf32>
    %c3_20 = arith.constant 3 : index
    %c0_21 = arith.constant 0 : index
    %c0_22 = arith.constant 0 : index
    %42 = vector.load %arg3[%c3_20, %c0_21, %c0_22] : memref<9x4x1xf32, #tpu.memory_space<vmem>>, vector<1x4x1xf32>
    %43 = vector.shape_cast %42 : vector<1x4x1xf32> to vector<4x1xf32>
    %44 = vector.shape_cast %43 : vector<4x1xf32> to vector<1x4x1xf32>
    %45 = vector.broadcast %44 : vector<1x4x1xf32> to vector<1x4x256xf32>
    %46 = arith.mulf %41, %45 : vector<1x4x256xf32>
    %47 = arith.addf %35, %46 : vector<1x4x256xf32>
    %c4 = arith.constant 4 : index
    %c0_23 = arith.constant 0 : index
    %c0_24 = arith.constant 0 : index
    %48 = vector.load %arg3[%c4, %c0_23, %c0_24] : memref<9x4x1xf32, #tpu.memory_space<vmem>>, vector<1x4x1xf32>
    %49 = vector.shape_cast %48 : vector<1x4x1xf32> to vector<4x1xf32>
    %50 = vector.shape_cast %49 : vector<4x1xf32> to vector<1x4x1xf32>
    %51 = vector.broadcast %50 : vector<1x4x1xf32> to vector<1x4x256xf32>
    %52 = arith.mulf %0, %51 : vector<1x4x256xf32>
    %53 = arith.addf %47, %52 : vector<1x4x256xf32>
    %c255_i32 = arith.constant 255 : i32
    %54 = tpu.dynamic_rotate %0 by %c255_i32 dim 2 : vector<1x4x256xf32>, i32 -> vector<1x4x256xf32>
    %c5 = arith.constant 5 : index
    %c0_25 = arith.constant 0 : index
    %c0_26 = arith.constant 0 : index
    %55 = vector.load %arg4[%c5, %c0_25, %c0_26] : memref<9x1x256xf32, #tpu.memory_space<vmem>>, vector<1x1x256xf32>
    %56 = vector.shape_cast %55 : vector<1x1x256xf32> to vector<1x256xf32>
    %57 = vector.shape_cast %56 : vector<1x256xf32> to vector<1x1x256xf32>
    %58 = vector.broadcast %57 : vector<1x1x256xf32> to vector<1x4x256xf32>
    %59 = arith.mulf %54, %58 : vector<1x4x256xf32>
    %c5_27 = arith.constant 5 : index
    %c0_28 = arith.constant 0 : index
    %c0_29 = arith.constant 0 : index
    %60 = vector.load %arg3[%c5_27, %c0_28, %c0_29] : memref<9x4x1xf32, #tpu.memory_space<vmem>>, vector<1x4x1xf32>
    %61 = vector.shape_cast %60 : vector<1x4x1xf32> to vector<4x1xf32>
    %62 = vector.shape_cast %61 : vector<4x1xf32> to vector<1x4x1xf32>
    %63 = vector.broadcast %62 : vector<1x4x1xf32> to vector<1x4x256xf32>
    %64 = arith.mulf %59, %63 : vector<1x4x256xf32>
    %65 = arith.addf %53, %64 : vector<1x4x256xf32>
    %c241_i32 = arith.constant 241 : i32
    %66 = tpu.dynamic_rotate %0 by %c241_i32 dim 2 : vector<1x4x256xf32>, i32 -> vector<1x4x256xf32>
    %c6 = arith.constant 6 : index
    %c0_30 = arith.constant 0 : index
    %c0_31 = arith.constant 0 : index
    %67 = vector.load %arg4[%c6, %c0_30, %c0_31] : memref<9x1x256xf32, #tpu.memory_space<vmem>>, vector<1x1x256xf32>
    %68 = vector.shape_cast %67 : vector<1x1x256xf32> to vector<1x256xf32>
    %69 = vector.shape_cast %68 : vector<1x256xf32> to vector<1x1x256xf32>
    %70 = vector.broadcast %69 : vector<1x1x256xf32> to vector<1x4x256xf32>
    %71 = arith.mulf %66, %70 : vector<1x4x256xf32>
    %c6_32 = arith.constant 6 : index
    %c0_33 = arith.constant 0 : index
    %c0_34 = arith.constant 0 : index
    %72 = vector.load %arg3[%c6_32, %c0_33, %c0_34] : memref<9x4x1xf32, #tpu.memory_space<vmem>>, vector<1x4x1xf32>
    %73 = vector.shape_cast %72 : vector<1x4x1xf32> to vector<4x1xf32>
    %74 = vector.shape_cast %73 : vector<4x1xf32> to vector<1x4x1xf32>
    %75 = vector.broadcast %74 : vector<1x4x1xf32> to vector<1x4x256xf32>
    %76 = arith.mulf %71, %75 : vector<1x4x256xf32>
    %77 = arith.addf %65, %76 : vector<1x4x256xf32>
    %c240_i32 = arith.constant 240 : i32
    %78 = tpu.dynamic_rotate %0 by %c240_i32 dim 2 : vector<1x4x256xf32>, i32 -> vector<1x4x256xf32>
    %c7 = arith.constant 7 : index
    %c0_35 = arith.constant 0 : index
    %c0_36 = arith.constant 0 : index
    %79 = vector.load %arg4[%c7, %c0_35, %c0_36] : memref<9x1x256xf32, #tpu.memory_space<vmem>>, vector<1x1x256xf32>
    %80 = vector.shape_cast %79 : vector<1x1x256xf32> to vector<1x256xf32>
    %81 = vector.shape_cast %80 : vector<1x256xf32> to vector<1x1x256xf32>
    %82 = vector.broadcast %81 : vector<1x1x256xf32> to vector<1x4x256xf32>
    %83 = arith.mulf %78, %82 : vector<1x4x256xf32>
    %c7_37 = arith.constant 7 : index
    %c0_38 = arith.constant 0 : index
    %c0_39 = arith.constant 0 : index
    %84 = vector.load %arg3[%c7_37, %c0_38, %c0_39] : memref<9x4x1xf32, #tpu.memory_space<vmem>>, vector<1x4x1xf32>
    %85 = vector.shape_cast %84 : vector<1x4x1xf32> to vector<4x1xf32>
    %86 = vector.shape_cast %85 : vector<4x1xf32> to vector<1x4x1xf32>
    %87 = vector.broadcast %86 : vector<1x4x1xf32> to vector<1x4x256xf32>
    %88 = arith.mulf %83, %87 : vector<1x4x256xf32>
    %89 = arith.addf %77, %88 : vector<1x4x256xf32>
    %c239_i32 = arith.constant 239 : i32
    %90 = tpu.dynamic_rotate %0 by %c239_i32 dim 2 : vector<1x4x256xf32>, i32 -> vector<1x4x256xf32>
    %c8 = arith.constant 8 : index
    %c0_40 = arith.constant 0 : index
    %c0_41 = arith.constant 0 : index
    %91 = vector.load %arg4[%c8, %c0_40, %c0_41] : memref<9x1x256xf32, #tpu.memory_space<vmem>>, vector<1x1x256xf32>
    %92 = vector.shape_cast %91 : vector<1x1x256xf32> to vector<1x256xf32>
    %93 = vector.shape_cast %92 : vector<1x256xf32> to vector<1x1x256xf32>
    %94 = vector.broadcast %93 : vector<1x1x256xf32> to vector<1x4x256xf32>
    %95 = arith.mulf %90, %94 : vector<1x4x256xf32>
    %c8_42 = arith.constant 8 : index
    %c0_43 = arith.constant 0 : index
    %c0_44 = arith.constant 0 : index
    %96 = vector.load %arg3[%c8_42, %c0_43, %c0_44] : memref<9x4x1xf32, #tpu.memory_space<vmem>>, vector<1x4x1xf32>
    %97 = vector.shape_cast %96 : vector<1x4x1xf32> to vector<4x1xf32>
    %98 = vector.shape_cast %97 : vector<4x1xf32> to vector<1x4x1xf32>
    %99 = vector.broadcast %98 : vector<1x4x1xf32> to vector<1x4x256xf32>
    %100 = arith.mulf %95, %99 : vector<1x4x256xf32>
    %101 = arith.addf %89, %100 : vector<1x4x256xf32>
    %c0_45 = arith.constant 0 : index
    %c0_46 = arith.constant 0 : index
    %102 = vector.load %arg5[%c0_45, %c0_46] : memref<4x1xf32, #tpu.memory_space<vmem>>, vector<4x1xf32>
    %103 = vector.shape_cast %102 : vector<4x1xf32> to vector<1x4x1xf32>
    %104 = vector.broadcast %103 : vector<1x4x1xf32> to vector<1x4x256xf32>
    %105 = arith.mulf %101, %104 : vector<1x4x256xf32>
    %c0_47 = arith.constant 0 : index
    %c0_48 = arith.constant 0 : index
    %106 = vector.load %arg6[%c0_47, %c0_48] : memref<4x1xf32, #tpu.memory_space<vmem>>, vector<4x1xf32>
    %107 = vector.shape_cast %106 : vector<4x1xf32> to vector<1x4x1xf32>
    %108 = vector.broadcast %107 : vector<1x4x1xf32> to vector<1x4x256xf32>
    %109 = arith.addf %105, %108 : vector<1x4x256xf32>
    %cst = arith.constant 0.000000e+00 : f32
    %110 = vector.broadcast %cst : f32 to vector<1x4x256xf32>
    %111 = arith.maximumf %109, %110 : vector<1x4x256xf32>
    %c0_49 = arith.constant 0 : index
    %c0_50 = arith.constant 0 : index
    %c0_51 = arith.constant 0 : index
    %112 = vector.load %arg7[%c0_49, %c0_50, %c0_51] : memref<1x4x256xf32, #tpu.memory_space<vmem>>, vector<1x4x256xf32>
    tpu.vector_store %arg7[%c0_49, %c0_50, %c0_51], %111 {strides = array<i32>} : memref<1x4x256xf32, #tpu.memory_space<vmem>>, vector<1x4x256xf32>,
    return
  }
  func.func @transform_0(%arg0: i32, %arg1: i32) -> (i32, i32, i32) {
    %c0_i32 = arith.constant 0 : i32
    %c0_i32_0 = arith.constant 0 : i32
    return %arg0, %arg1, %c0_i32 : i32, i32, i32
  }
  func.func @transform_1(%arg0: i32, %arg1: i32) -> (i32, i32, i32) {
    %c0_i32 = arith.constant 0 : i32
    %c0_i32_0 = arith.constant 0 : i32
    %c0_i32_1 = arith.constant 0 : i32
    return %c0_i32, %arg1, %c0_i32_0 : i32, i32, i32
  }
  func.func @transform_2(%arg0: i32, %arg1: i32) -> (i32, i32, i32) {
    %c0_i32 = arith.constant 0 : i32
    %c0_i32_0 = arith.constant 0 : i32
    %c0_i32_1 = arith.constant 0 : i32
    %c0_i32_2 = arith.constant 0 : i32
    return %c0_i32, %c0_i32_0, %c0_i32_1 : i32, i32, i32
  }
  func.func @transform_3(%arg0: i32, %arg1: i32) -> (i32, i32) {
    %c0_i32 = arith.constant 0 : i32
    %c0_i32_0 = arith.constant 0 : i32
    return %arg1, %c0_i32 : i32, i32
  }
  func.func @transform_4(%arg0: i32, %arg1: i32) -> (i32, i32) {
    %c0_i32 = arith.constant 0 : i32
    %c0_i32_0 = arith.constant 0 : i32
    return %arg1, %c0_i32 : i32, i32
  }
  func.func @transform_5(%arg0: i32, %arg1: i32) -> (i32, i32, i32) {
    %c0_i32 = arith.constant 0 : i32
    %c0_i32_0 = arith.constant 0 : i32
    return %arg0, %arg1, %c0_i32 : i32, i32, i32
  }
}

module attributes {stable_mosaic.version = 11 : i64} {
  func.func @_conv_stats_kernel(%arg0: i32, %arg1: i32, %arg2: memref<1x4x256xf32, #tpu.memory_space<vmem>>, %arg3: memref<9x4x1xf32, #tpu.memory_space<vmem>>, %arg4: memref<9x1x256xf32, #tpu.memory_space<vmem>>, %arg5: memref<1x4x2xf32, #tpu.memory_space<vmem>>) attributes {dimension_semantics = [#tpu.dimension_semantics<parallel>, #tpu.dimension_semantics<parallel>], iteration_bounds = array<i64: 2, 1>, scalar_prefetch = 0 : i64, scratch_operands = 0 : i64, tpu.core_type = #tpu.core_type<tc>, window_params = [{transform_indices = @transform_0, window_bounds = array<i64: 1, 4, 256>}, {transform_indices = @transform_1, window_bounds = array<i64: 9, 4, 1>}, {pipeline_mode = #tpu.pipeline_mode<synchronous>, transform_indices = @transform_2, window_bounds = array<i64: 9, 1, 256>}, {transform_indices = @transform_3, window_bounds = array<i64: 1, 4, 2>}]} {
    %c0 = arith.constant 0 : index
    %c0_0 = arith.constant 0 : index
    %c0_1 = arith.constant 0 : index
    %0 = vector.load %arg2[%c0, %c0_0, %c0_1] : memref<1x4x256xf32, #tpu.memory_space<vmem>>, vector<1x4x256xf32>
    %c17_i32 = arith.constant 17 : i32
    %1 = tpu.dynamic_rotate %0 by %c17_i32 dim 2 : vector<1x4x256xf32>, i32 -> vector<1x4x256xf32>
    %c0_2 = arith.constant 0 : index
    %c0_3 = arith.constant 0 : index
    %c0_4 = arith.constant 0 : index
    %2 = vector.load %arg4[%c0_2, %c0_3, %c0_4] : memref<9x1x256xf32, #tpu.memory_space<vmem>>, vector<1x1x256xf32>
    %3 = vector.shape_cast %2 : vector<1x1x256xf32> to vector<1x256xf32>
    %4 = vector.shape_cast %3 : vector<1x256xf32> to vector<1x1x256xf32>
    %5 = vector.broadcast %4 : vector<1x1x256xf32> to vector<1x4x256xf32>
    %6 = arith.mulf %1, %5 : vector<1x4x256xf32>
    %c0_5 = arith.constant 0 : index
    %c0_6 = arith.constant 0 : index
    %c0_7 = arith.constant 0 : index
    %7 = vector.load %arg3[%c0_5, %c0_6, %c0_7] : memref<9x4x1xf32, #tpu.memory_space<vmem>>, vector<1x4x1xf32>
    %8 = vector.shape_cast %7 : vector<1x4x1xf32> to vector<4x1xf32>
    %9 = vector.shape_cast %8 : vector<4x1xf32> to vector<1x4x1xf32>
    %10 = vector.broadcast %9 : vector<1x4x1xf32> to vector<1x4x256xf32>
    %11 = arith.mulf %6, %10 : vector<1x4x256xf32>
    %c16_i32 = arith.constant 16 : i32
    %12 = tpu.dynamic_rotate %0 by %c16_i32 dim 2 : vector<1x4x256xf32>, i32 -> vector<1x4x256xf32>
    %c1 = arith.constant 1 : index
    %c0_8 = arith.constant 0 : index
    %c0_9 = arith.constant 0 : index
    %13 = vector.load %arg4[%c1, %c0_8, %c0_9] : memref<9x1x256xf32, #tpu.memory_space<vmem>>, vector<1x1x256xf32>
    %14 = vector.shape_cast %13 : vector<1x1x256xf32> to vector<1x256xf32>
    %15 = vector.shape_cast %14 : vector<1x256xf32> to vector<1x1x256xf32>
    %16 = vector.broadcast %15 : vector<1x1x256xf32> to vector<1x4x256xf32>
    %17 = arith.mulf %12, %16 : vector<1x4x256xf32>
    %c1_10 = arith.constant 1 : index
    %c0_11 = arith.constant 0 : index
    %c0_12 = arith.constant 0 : index
    %18 = vector.load %arg3[%c1_10, %c0_11, %c0_12] : memref<9x4x1xf32, #tpu.memory_space<vmem>>, vector<1x4x1xf32>
    %19 = vector.shape_cast %18 : vector<1x4x1xf32> to vector<4x1xf32>
    %20 = vector.shape_cast %19 : vector<4x1xf32> to vector<1x4x1xf32>
    %21 = vector.broadcast %20 : vector<1x4x1xf32> to vector<1x4x256xf32>
    %22 = arith.mulf %17, %21 : vector<1x4x256xf32>
    %23 = arith.addf %11, %22 : vector<1x4x256xf32>
    %c15_i32 = arith.constant 15 : i32
    %24 = tpu.dynamic_rotate %0 by %c15_i32 dim 2 : vector<1x4x256xf32>, i32 -> vector<1x4x256xf32>
    %c2 = arith.constant 2 : index
    %c0_13 = arith.constant 0 : index
    %c0_14 = arith.constant 0 : index
    %25 = vector.load %arg4[%c2, %c0_13, %c0_14] : memref<9x1x256xf32, #tpu.memory_space<vmem>>, vector<1x1x256xf32>
    %26 = vector.shape_cast %25 : vector<1x1x256xf32> to vector<1x256xf32>
    %27 = vector.shape_cast %26 : vector<1x256xf32> to vector<1x1x256xf32>
    %28 = vector.broadcast %27 : vector<1x1x256xf32> to vector<1x4x256xf32>
    %29 = arith.mulf %24, %28 : vector<1x4x256xf32>
    %c2_15 = arith.constant 2 : index
    %c0_16 = arith.constant 0 : index
    %c0_17 = arith.constant 0 : index
    %30 = vector.load %arg3[%c2_15, %c0_16, %c0_17] : memref<9x4x1xf32, #tpu.memory_space<vmem>>, vector<1x4x1xf32>
    %31 = vector.shape_cast %30 : vector<1x4x1xf32> to vector<4x1xf32>
    %32 = vector.shape_cast %31 : vector<4x1xf32> to vector<1x4x1xf32>
    %33 = vector.broadcast %32 : vector<1x4x1xf32> to vector<1x4x256xf32>
    %34 = arith.mulf %29, %33 : vector<1x4x256xf32>
    %35 = arith.addf %23, %34 : vector<1x4x256xf32>
    %c1_i32 = arith.constant 1 : i32
    %36 = tpu.dynamic_rotate %0 by %c1_i32 dim 2 : vector<1x4x256xf32>, i32 -> vector<1x4x256xf32>
    %c3 = arith.constant 3 : index
    %c0_18 = arith.constant 0 : index
    %c0_19 = arith.constant 0 : index
    %37 = vector.load %arg4[%c3, %c0_18, %c0_19] : memref<9x1x256xf32, #tpu.memory_space<vmem>>, vector<1x1x256xf32>
    %38 = vector.shape_cast %37 : vector<1x1x256xf32> to vector<1x256xf32>
    %39 = vector.shape_cast %38 : vector<1x256xf32> to vector<1x1x256xf32>
    %40 = vector.broadcast %39 : vector<1x1x256xf32> to vector<1x4x256xf32>
    %41 = arith.mulf %36, %40 : vector<1x4x256xf32>
    %c3_20 = arith.constant 3 : index
    %c0_21 = arith.constant 0 : index
    %c0_22 = arith.constant 0 : index
    %42 = vector.load %arg3[%c3_20, %c0_21, %c0_22] : memref<9x4x1xf32, #tpu.memory_space<vmem>>, vector<1x4x1xf32>
    %43 = vector.shape_cast %42 : vector<1x4x1xf32> to vector<4x1xf32>
    %44 = vector.shape_cast %43 : vector<4x1xf32> to vector<1x4x1xf32>
    %45 = vector.broadcast %44 : vector<1x4x1xf32> to vector<1x4x256xf32>
    %46 = arith.mulf %41, %45 : vector<1x4x256xf32>
    %47 = arith.addf %35, %46 : vector<1x4x256xf32>
    %c4 = arith.constant 4 : index
    %c0_23 = arith.constant 0 : index
    %c0_24 = arith.constant 0 : index
    %48 = vector.load %arg3[%c4, %c0_23, %c0_24] : memref<9x4x1xf32, #tpu.memory_space<vmem>>, vector<1x4x1xf32>
    %49 = vector.shape_cast %48 : vector<1x4x1xf32> to vector<4x1xf32>
    %50 = vector.shape_cast %49 : vector<4x1xf32> to vector<1x4x1xf32>
    %51 = vector.broadcast %50 : vector<1x4x1xf32> to vector<1x4x256xf32>
    %52 = arith.mulf %0, %51 : vector<1x4x256xf32>
    %53 = arith.addf %47, %52 : vector<1x4x256xf32>
    %c255_i32 = arith.constant 255 : i32
    %54 = tpu.dynamic_rotate %0 by %c255_i32 dim 2 : vector<1x4x256xf32>, i32 -> vector<1x4x256xf32>
    %c5 = arith.constant 5 : index
    %c0_25 = arith.constant 0 : index
    %c0_26 = arith.constant 0 : index
    %55 = vector.load %arg4[%c5, %c0_25, %c0_26] : memref<9x1x256xf32, #tpu.memory_space<vmem>>, vector<1x1x256xf32>
    %56 = vector.shape_cast %55 : vector<1x1x256xf32> to vector<1x256xf32>
    %57 = vector.shape_cast %56 : vector<1x256xf32> to vector<1x1x256xf32>
    %58 = vector.broadcast %57 : vector<1x1x256xf32> to vector<1x4x256xf32>
    %59 = arith.mulf %54, %58 : vector<1x4x256xf32>
    %c5_27 = arith.constant 5 : index
    %c0_28 = arith.constant 0 : index
    %c0_29 = arith.constant 0 : index
    %60 = vector.load %arg3[%c5_27, %c0_28, %c0_29] : memref<9x4x1xf32, #tpu.memory_space<vmem>>, vector<1x4x1xf32>
    %61 = vector.shape_cast %60 : vector<1x4x1xf32> to vector<4x1xf32>
    %62 = vector.shape_cast %61 : vector<4x1xf32> to vector<1x4x1xf32>
    %63 = vector.broadcast %62 : vector<1x4x1xf32> to vector<1x4x256xf32>
    %64 = arith.mulf %59, %63 : vector<1x4x256xf32>
    %65 = arith.addf %53, %64 : vector<1x4x256xf32>
    %c241_i32 = arith.constant 241 : i32
    %66 = tpu.dynamic_rotate %0 by %c241_i32 dim 2 : vector<1x4x256xf32>, i32 -> vector<1x4x256xf32>
    %c6 = arith.constant 6 : index
    %c0_30 = arith.constant 0 : index
    %c0_31 = arith.constant 0 : index
    %67 = vector.load %arg4[%c6, %c0_30, %c0_31] : memref<9x1x256xf32, #tpu.memory_space<vmem>>, vector<1x1x256xf32>
    %68 = vector.shape_cast %67 : vector<1x1x256xf32> to vector<1x256xf32>
    %69 = vector.shape_cast %68 : vector<1x256xf32> to vector<1x1x256xf32>
    %70 = vector.broadcast %69 : vector<1x1x256xf32> to vector<1x4x256xf32>
    %71 = arith.mulf %66, %70 : vector<1x4x256xf32>
    %c6_32 = arith.constant 6 : index
    %c0_33 = arith.constant 0 : index
    %c0_34 = arith.constant 0 : index
    %72 = vector.load %arg3[%c6_32, %c0_33, %c0_34] : memref<9x4x1xf32, #tpu.memory_space<vmem>>, vector<1x4x1xf32>
    %73 = vector.shape_cast %72 : vector<1x4x1xf32> to vector<4x1xf32>
    %74 = vector.shape_cast %73 : vector<4x1xf32> to vector<1x4x1xf32>
    %75 = vector.broadcast %74 : vector<1x4x1xf32> to vector<1x4x256xf32>
    %76 = arith.mulf %71, %75 : vector<1x4x256xf32>
    %77 = arith.addf %65, %76 : vector<1x4x256xf32>
    %c240_i32 = arith.constant 240 : i32
    %78 = tpu.dynamic_rotate %0 by %c240_i32 dim 2 : vector<1x4x256xf32>, i32 -> vector<1x4x256xf32>
    %c7 = arith.constant 7 : index
    %c0_35 = arith.constant 0 : index
    %c0_36 = arith.constant 0 : index
    %79 = vector.load %arg4[%c7, %c0_35, %c0_36] : memref<9x1x256xf32, #tpu.memory_space<vmem>>, vector<1x1x256xf32>
    %80 = vector.shape_cast %79 : vector<1x1x256xf32> to vector<1x256xf32>
    %81 = vector.shape_cast %80 : vector<1x256xf32> to vector<1x1x256xf32>
    %82 = vector.broadcast %81 : vector<1x1x256xf32> to vector<1x4x256xf32>
    %83 = arith.mulf %78, %82 : vector<1x4x256xf32>
    %c7_37 = arith.constant 7 : index
    %c0_38 = arith.constant 0 : index
    %c0_39 = arith.constant 0 : index
    %84 = vector.load %arg3[%c7_37, %c0_38, %c0_39] : memref<9x4x1xf32, #tpu.memory_space<vmem>>, vector<1x4x1xf32>
    %85 = vector.shape_cast %84 : vector<1x4x1xf32> to vector<4x1xf32>
    %86 = vector.shape_cast %85 : vector<4x1xf32> to vector<1x4x1xf32>
    %87 = vector.broadcast %86 : vector<1x4x1xf32> to vector<1x4x256xf32>
    %88 = arith.mulf %83, %87 : vector<1x4x256xf32>
    %89 = arith.addf %77, %88 : vector<1x4x256xf32>
    %c239_i32 = arith.constant 239 : i32
    %90 = tpu.dynamic_rotate %0 by %c239_i32 dim 2 : vector<1x4x256xf32>, i32 -> vector<1x4x256xf32>
    %c8 = arith.constant 8 : index
    %c0_40 = arith.constant 0 : index
    %c0_41 = arith.constant 0 : index
    %91 = vector.load %arg4[%c8, %c0_40, %c0_41] : memref<9x1x256xf32, #tpu.memory_space<vmem>>, vector<1x1x256xf32>
    %92 = vector.shape_cast %91 : vector<1x1x256xf32> to vector<1x256xf32>
    %93 = vector.shape_cast %92 : vector<1x256xf32> to vector<1x1x256xf32>
    %94 = vector.broadcast %93 : vector<1x1x256xf32> to vector<1x4x256xf32>
    %95 = arith.mulf %90, %94 : vector<1x4x256xf32>
    %c8_42 = arith.constant 8 : index
    %c0_43 = arith.constant 0 : index
    %c0_44 = arith.constant 0 : index
    %96 = vector.load %arg3[%c8_42, %c0_43, %c0_44] : memref<9x4x1xf32, #tpu.memory_space<vmem>>, vector<1x4x1xf32>
    %97 = vector.shape_cast %96 : vector<1x4x1xf32> to vector<4x1xf32>
    %98 = vector.shape_cast %97 : vector<4x1xf32> to vector<1x4x1xf32>
    %99 = vector.broadcast %98 : vector<1x4x1xf32> to vector<1x4x256xf32>
    %100 = arith.mulf %95, %99 : vector<1x4x256xf32>
    %101 = arith.addf %89, %100 : vector<1x4x256xf32>
    %cst = arith.constant dense<0.000000e+00> : vector<1x4xf32>
    %102 = vector.multi_reduction <add>, %101, %cst [2] : vector<1x4x256xf32> to vector<1x4xf32>
    %103 = vector.shape_cast %102 : vector<1x4xf32> to vector<1x4x1xf32>
    %cst_45 = arith.constant 3.906250e-03 : f32
    %104 = vector.broadcast %cst_45 : f32 to vector<1x4x1xf32>
    %105 = arith.mulf %103, %104 : vector<1x4x1xf32>
    %106 = vector.broadcast %105 : vector<1x4x1xf32> to vector<1x4x256xf32>
    %107 = arith.subf %101, %106 : vector<1x4x256xf32>
    %108 = arith.mulf %107, %107 : vector<1x4x256xf32>
    %cst_46 = arith.constant dense<0.000000e+00> : vector<1x4xf32>
    %109 = vector.multi_reduction <add>, %108, %cst_46 [2] : vector<1x4x256xf32> to vector<1x4xf32>
    %110 = vector.shape_cast %109 : vector<1x4xf32> to vector<1x4x1xf32>
    %c0_47 = arith.constant 0 : index
    %c0_48 = arith.constant 0 : index
    %c0_49 = arith.constant 0 : index
    %111 = vector.load %arg5[%c0_47, %c0_48, %c0_49] : memref<1x4x2xf32, #tpu.memory_space<vmem>>, vector<1x4x1xf32>
    tpu.vector_store %arg5[%c0_47, %c0_48, %c0_49], %105 {strides = array<i32>} : memref<1x4x2xf32, #tpu.memory_space<vmem>>, vector<1x4x1xf32>,
    %c0_50 = arith.constant 0 : index
    %c0_51 = arith.constant 0 : index
    %c1_52 = arith.constant 1 : index
    %112 = vector.load %arg5[%c0_50, %c0_51, %c1_52] : memref<1x4x2xf32, #tpu.memory_space<vmem>>, vector<1x4x1xf32>
    tpu.vector_store %arg5[%c0_50, %c0_51, %c1_52], %110 {strides = array<i32>} : memref<1x4x2xf32, #tpu.memory_space<vmem>>, vector<1x4x1xf32>,
    return
  }
  func.func @transform_0(%arg0: i32, %arg1: i32) -> (i32, i32, i32) {
    %c0_i32 = arith.constant 0 : i32
    %c0_i32_0 = arith.constant 0 : i32
    return %arg0, %arg1, %c0_i32 : i32, i32, i32
  }
  func.func @transform_1(%arg0: i32, %arg1: i32) -> (i32, i32, i32) {
    %c0_i32 = arith.constant 0 : i32
    %c0_i32_0 = arith.constant 0 : i32
    %c0_i32_1 = arith.constant 0 : i32
    return %c0_i32, %arg1, %c0_i32_0 : i32, i32, i32
  }
  func.func @transform_2(%arg0: i32, %arg1: i32) -> (i32, i32, i32) {
    %c0_i32 = arith.constant 0 : i32
    %c0_i32_0 = arith.constant 0 : i32
    %c0_i32_1 = arith.constant 0 : i32
    %c0_i32_2 = arith.constant 0 : i32
    return %c0_i32, %c0_i32_0, %c0_i32_1 : i32, i32, i32
  }
  func.func @transform_3(%arg0: i32, %arg1: i32) -> (i32, i32, i32) {
    %c0_i32 = arith.constant 0 : i32
    %c0_i32_0 = arith.constant 0 : i32
    return %arg0, %arg1, %c0_i32 : i32, i32, i32
  }
}

</mosaic_0001>

<llo_original>
// kernel: basic_sep_conv.2
$region0: #{basic_sep_conv.2}
  #allocation0 [shape = 'u32[]', space=smem, size = 0x4, offset = 0x4, fixed_abs, tag = 'smem constant byte address 0x4 - core index']
  #allocation1 [shape = 'u32[144,128]{1,0:T(1,128)}', space=vmem, size = 0x12000, scoped, tag = 'internal scratch']
  %s0 = inlined_call_operand.vmem [shape: f32[2,4,256], index: 0, kind: input, shape index: {}]
  %s1 = inlined_call_operand.vmem [shape: f32[9,4,1], index: 1, kind: input, shape index: {}]
  %s2 = inlined_call_operand.vmem [shape: f32[9,1,256], index: 2, kind: input, shape index: {}]
  %s3 = inlined_call_operand.vmem [shape: f32[2,4,2], index: 3, kind: output, shape index: {}]
  %s4 = sld [smem:[#allocation0]]
  $region45: #{basic_sep_conv.2} parent=0
    _
  %s6 = ssub.s32 1, %s4
  %s7 = scalar_select 0, %s6, %s4
  loop: start=0, step=1, limit=4
  $region2: #{basic_sep_conv.2} parent=0 // loop_pre_header
    _
  $region3: #{basic_sep_conv.2} parent=0 // loop_header
    %s9 = sphi 0, %s13
    %p10 = scmp.ge.s32.totalorder %s9, 4
    %s16 = sphi 0, %s28
    %s17 = sphi 0, %s24
    %s18 = sphi 0, %s16
    %s19 = sphi 0, %s17
    %s20 = sphi 0, %s18
    %s21 = sphi 0, %s19
    %s33 = sphi 0, %s35
    %s36 = sphi 0, %s33
    %s37 = sphi 0, %s36
    %s53 = sphi 0, %s37
    %s59 = sphi 0, %s61
    %s62 = sphi 0, %s59
    %s63 = sphi 0, %s62
    %s79 = sphi 0, %s63
    %s83 = sphi 0, %s83
    %s85 = sphi 0, %s83
    %s86 = sphi 0, %s85
    %s100 = sphi 0, %s86
    %s108 = sphi 0, %s110
    %s111 = sphi 0, %s108
    %s112 = sphi 0, %s111
    %s128 = sphi 0, %s112
  $region4: #{basic_sep_conv.2} parent=0 // loop_header_branch
    %12 = sbr.rel (%p10) target = $region8
  $region5: #{basic_sep_conv.2} parent=0 // loop_body
    %s14 = ssub.s32 %s9, 1
    %s15 = ssub.s32 %s9, 2
    %s22 = sadd.s32 1, %s17
    %p23 = scmp.ge.s32.totalorder %s22, 1
    %s24 = scalar_select %p23, 0, %s22
    %s25 = sadd.s32 1, %s16
    %s26 = scalar_select %p23, %s25, %s16
    %p27 = scmp.ge.s32.totalorder %s26, 2
    %s28 = scalar_select %p27, 0, %s26
    %s29 = ssub.s32 %s16, %s28
    %s30 = ssub.s32 %s17, %s24
    %s31 = sor.u32 %s29, %s30
    %p32 = scmp.eq.s32.totalorder %s31, 0
    %s34 = sadd.s32 %s33, 1
    %s35 = scalar_select %p32, %s33, %s34
    %p38 = pneg %p32
    %p39 = scmp.eq.s32.totalorder %s9, 1
    %p40 = por %p38, %p39
    %p41 = scmp.ne.s32.totalorder %s33, %s36
    %p42 = scmp.eq.s32.totalorder %s9, 0
    %p43 = por %p41, %p42
    %p44 = scmp.ne.s32.totalorder %s33, %s36
    %p45 = scmp.eq.s32.totalorder %s14, 1
    %p46 = por %p44, %p45
    %p47 = scmp.ne.s32.totalorder %s36, %s37
    %p48 = scmp.eq.s32.totalorder %s14, 0
    %p49 = por %p47, %p48
    %p50 = scmp.ne.s32.totalorder %s36, %s37
    %p51 = scmp.eq.s32.totalorder %s15, 1
    %p52 = por %p50, %p51
    %p54 = scmp.ne.s32.totalorder %s37, %s53
    %p55 = scmp.eq.s32.totalorder %s15, 0
    %p56 = por %p54, %p55
    %s57 = ssub.s32 %s17, %s24
    %p58 = scmp.eq.s32.totalorder %s57, 0
    %s60 = sadd.s32 %s59, 1
    %s61 = scalar_select %p58, %s59, %s60
    %p64 = pneg %p58
    %p65 = scmp.eq.s32.totalorder %s9, 1
    %p66 = por %p64, %p65
    %p67 = scmp.ne.s32.totalorder %s59, %s62
    %p68 = scmp.eq.s32.totalorder %s9, 0
    %p69 = por %p67, %p68
    %p70 = scmp.ne.s32.totalorder %s59, %s62
    %p71 = scmp.eq.s32.totalorder %s14, 1
    %p72 = por %p70, %p71
    %p73 = scmp.ne.s32.totalorder %s62, %s63
    %p74 = scmp.eq.s32.totalorder %s14, 0
    %p75 = por %p73, %p74
    %p76 = scmp.ne.s32.totalorder %s62, %s63
    %p77 = scmp.eq.s32.totalorder %s15, 1
    %p78 = por %p76, %p77
    %p80 = scmp.ne.s32.totalorder %s63, %s79
    %p81 = scmp.eq.s32.totalorder %s15, 0
    %p82 = por %p80, %p81
    %s84 = sadd.s32 %s83, 1
    %p87 = scmp.eq.s32.totalorder %s9, 1
    %p88 = scmp.ne.s32.totalorder %s83, %s85
    %p89 = scmp.eq.s32.totalorder %s9, 0
    %p90 = por %p88, %p89
    %p91 = scmp.ne.s32.totalorder %s83, %s85
    %p92 = scmp.eq.s32.totalorder %s14, 1
    %p93 = por %p91, %p92
    %p94 = scmp.ne.s32.totalorder %s85, %s86
    %p95 = scmp.eq.s32.totalorder %s14, 0
    %p96 = por %p94, %p95
    %p97 = scmp.ne.s32.totalorder %s85, %s86
    %p98 = scmp.eq.s32.totalorder %s15, 1
    %p99 = por %p97, %p98
    %p101 = scmp.ne.s32.totalorder %s86, %s100
    %p102 = scmp.eq.s32.totalorder %s15, 0
    %p103 = por %p101, %p102
    %s104 = ssub.s32 %s16, %s28
    %s105 = ssub.s32 %s17, %s24
    %s106 = sor.u32 %s104, %s105
    %p107 = scmp.eq.s32.totalorder %s106, 0
    %s109 = sadd.s32 %s108, 1
    %s110 = scalar_select %p107, %s108, %s109
    %p113 = pneg %p107
    %p114 = scmp.eq.s32.totalorder %s9, 1
    %p115 = por %p113, %p114
    %p116 = scmp.ne.s32.totalorder %s108, %s111
    %p117 = scmp.eq.s32.totalorder %s9, 0
    %p118 = por %p116, %p117
    %p119 = scmp.ne.s32.totalorder %s108, %s111
    %p120 = scmp.eq.s32.totalorder %s14, 1
    %p121 = por %p119, %p120
    %p122 = scmp.ne.s32.totalorder %s111, %s112
    %p123 = scmp.eq.s32.totalorder %s14, 0
    %p124 = por %p122, %p123
    %p125 = scmp.ne.s32.totalorder %s111, %s112
    %p126 = scmp.eq.s32.totalorder %s15, 1
    %p127 = por %p125, %p126
    %p129 = scmp.ne.s32.totalorder %s112, %s128
    %p130 = scmp.eq.s32.totalorder %s15, 0
    %p131 = por %p129, %p130
    %p132 = scmp.le.s32.totalorder 1, %s9
    %p133 = scmp.lt.s32.totalorder %s9, 3
    %p134 = pnand %p132, %p133
    %p135 = pneg %p134
    // Predicated region
    $region9: #{basic_sep_conv.2} parent=5 // pred_check
      _
    $region10: #{basic_sep_conv.2} parent=5 // pred_check_branch
      %137 = sbr.rel (%p134) target = $region12
    $region11: #{basic_sep_conv.2} parent=5 // pred_region
      %s138 = ssub.s32 %s9, 1
      // Predicated region
      $region13: #{basic_sep_conv.2} parent=11 // pred_check
        %p139 = pneg %p75
      $region14: #{basic_sep_conv.2} parent=11 // pred_check_branch
        %141 = sbr.rel (%p139) target = $region16
      $region15: #{basic_sep_conv.2} parent=11 // pred_region
        %p142 = scmp.lt.s32.totalorder %s19, 0
        %s143 = scalar_select %p142, %s19, 0
        %s144 = smul.addr %s143, 4
        %s145 = scalar_lea.vmem %s1, %s144
      $region16: #{basic_sep_conv.2} parent=11 // pred_fallthru
        _
      // Predicated region
      $region17: #{basic_sep_conv.2} parent=11 // pred_check
        %p146 = pneg %p96
      $region18: #{basic_sep_conv.2} parent=11 // pred_check_branch
        %148 = sbr.rel (%p146) target = $region20
      $region19: #{basic_sep_conv.2} parent=11 // pred_region
        _
      $region20: #{basic_sep_conv.2} parent=11 // pred_fallthru
        _
    $region12: #{basic_sep_conv.2} parent=5 // pred_fallthru
      _
    %p149 = scmp.lt.s32.totalorder %s9, 2
    // Predicated region
    $region21: #{basic_sep_conv.2} parent=5 // pred_check
      %p150 = pneg %p149
    $region22: #{basic_sep_conv.2} parent=5 // pred_check_branch
      %152 = sbr.rel (%p150) target = $region24
    $region23: #{basic_sep_conv.2} parent=5 // pred_region
      // Predicated region
      $region25: #{basic_sep_conv.2} parent=23 // pred_check
        %p153 = pneg %p43
      $region26: #{basic_sep_conv.2} parent=23 // pred_check_branch
        %155 = sbr.rel (%p153) target = $region28
      $region27: #{basic_sep_conv.2} parent=23 // pred_region
        %p156 = scmp.lt.s32.totalorder %s16, 1
        %s157 = scalar_select %p156, %s16, 1
        %p158 = scmp.lt.s32.totalorder %s17, 0
        %s159 = scalar_select %p158, %s17, 0
        %s160 = smul.addr %s159, 2
        %s161 = smul.addr %s157, 2
        %s162 = sadd.s32 %s160, %s161
        %s163 = smul.addr %s162, 4
        %s164 = scalar_lea.vmem %s0, %s163
      $region28: #{basic_sep_conv.2} parent=23 // pred_fallthru
        _
    $region24: #{basic_sep_conv.2} parent=5 // pred_fallthru
      _
    %p165 = scmp.le.s32.totalorder 1, %s9
    %p166 = scmp.lt.s32.totalorder %s9, 3
    %p167 = pnand %p165, %p166
    %p168 = pneg %p167
    // Predicated region
    $region29: #{basic_sep_conv.2} parent=5 // pred_check
      _
    $region30: #{basic_sep_conv.2} parent=5 // pred_check_branch
      %170 = sbr.rel (%p167) target = $region32
    $region31: #{basic_sep_conv.2} parent=5 // pred_region
      %s171 = ssub.s32 %s9, 1
      %p172 = scmp.lt.s32.totalorder %s18, 1
      %s173 = scalar_select %p172, %s18, 1
      %p174 = scmp.lt.s32.totalorder %s19, 0
      %s175 = scalar_select %p174, %s19, 0
      %s176 = smul.addr %s175, 2
      %s177 = smul.addr %s173, 2
      %s178 = sadd.s32 %s176, %s177
      %s179 = smul.addr %s178, 4
      %s180 = scalar_lea.vmem %s0, %s179
      %p181 = pneg %p49
      %p182 = pneg %p46
      %p183 = scmp.lt.s32.totalorder %s19, 0
      %s184 = scalar_select %p183, %s19, 0
      %s185 = smul.addr %s184, 4
      %s186 = scalar_lea.vmem %s1, %s185
      %p187 = pneg %p75
      %p188 = pneg %p72
      %p189 = pneg %p96
      %p190 = pneg %p93
      %p191 = pneg %p124
      %p192 = pneg %p121
      %p193 = scmp.lt.s32.totalorder %s18, 1
      %s194 = scalar_select %p193, %s18, 1
      %p195 = scmp.lt.s32.totalorder %s19, 0
      %s196 = scalar_select %p195, %s19, 0
      %s197 = sadd.s32 %s196, %s194
      %s198 = smul.addr %s197, 4
      %s199 = scalar_lea.vmem %s3, %s198
      %p200 = scmp.lt.s32.totalorder %s18, 1
      %s201 = scalar_select %p200, %s18, 1
      %p202 = scmp.lt.s32.totalorder %s19, 0
      %s203 = scalar_select %p202, %s19, 0
      %s204 = smul.addr %s203, 2
      %s205 = smul.addr %s201, 2
      %s206 = sadd.s32 %s204, %s205
      %s207 = smul.addr %s206, 4
      %s208 = scalar_lea.vmem %s0, %s207
      %p209 = scmp.lt.s32.totalorder %s19, 0
      %s210 = scalar_select %p209, %s19, 0
      %s211 = smul.addr %s210, 4
      %s212 = scalar_lea.vmem %s1, %s211
      %p213 = scmp.lt.s32.totalorder %s18, 1
      %s214 = scalar_select %p213, %s18, 1
      %p215 = scmp.lt.s32.totalorder %s19, 0
      %s216 = scalar_select %p215, %s19, 0
      %s217 = sadd.s32 %s216, %s214
      %s218 = smul.addr %s217, 4
      %s219 = scalar_lea.vmem %s3, %s218
      %v220 = vld [vmem:[%s208] sm:$0xff]
      %v222 = vcombine.high %v220, %v220
      %224 = vrot.lane.b32.xlu0 %v220, 17
      %v225 = vpop.permute.xlu0 %224
      %226 = vrot.lane.b32.xlu0 %v222, 17
      %v227 = vpop.permute.xlu0 %226
      %v228 = vlaneseq
      %v229 = vand.u32 %v228, 127
      %vm230 = vcmp.lt.s32.totalorder %v229, 17
      %v231 = vsel %vm230, %v225, %v227
      %v232 = vsel %vm230, %v227, %v225
      %v233 = vld [vmem:[%s2] sm:$0x3]
      %v235 = vlaneseq
      %v236 = vshrl.u32 %v235, 7
      %v237 = vsub.s32 0, %v236
      %v238 = vrot.slane %v233, %v237
      %v239 = vlaneseq
      %v240 = vshrl.u32 %v239, 7
      %v241 = vsub.s32 1, %v240
      %v242 = vrot.slane %v233, %v241
      %v245 = vmul.f32 %v232, %v238
      %v246 = vmul.f32 %v231, %v242
      %v247 = vld [vmem:[%s212] sm:$0xf]
      %249 = vset.pattern.permute.xlu0 0
      %250 = vperm.xlu0 %249, %v247
      %v251 = vpop.permute.xlu0 %250
      %v253 = vmul.f32 %v245, %v251
      %v254 = vmul.f32 %v246, %v251
      %255 = vrot.lane.b32.xlu0 %v220, 16
      %v256 = vpop.permute.xlu0 %255
      %257 = vrot.lane.b32.xlu0 %v222, 16
      %v258 = vpop.permute.xlu0 %257
      %vm259 = vcmp.lt.s32.totalorder %v229, 16
      %v260 = vsel %vm259, %v256, %v258
      %v261 = vsel %vm259, %v258, %v256
      %s262 = scalar_lea.vmem %s2, 2
      %v263 = vld [vmem:[%s262] sm:$0x3]
      %v265 = vlaneseq
      %v266 = vshrl.u32 %v265, 7
      %v267 = vsub.s32 0, %v266
      %v268 = vrot.slane %v263, %v267
      %v269 = vlaneseq
      %v270 = vshrl.u32 %v269, 7
      %v271 = vsub.s32 1, %v270
      %v272 = vrot.slane %v263, %v271
      %v275 = vmul.f32 %v261, %v268
      %v276 = vmul.f32 %v260, %v272
      %s277 = scalar_lea.vmem %s212, 4
      %v278 = vld [vmem:[%s277] sm:$0xf]
      %280 = vset.pattern.permute.xlu0 0
      %281 = vperm.xlu0 %280, %v278
      %v282 = vpop.permute.xlu0 %281
      %v284 = vmul.f32 %v275, %v282
      %v285 = vmul.f32 %v276, %v282
      %v286 = vadd.f32 %v253, %v284
      %v287 = vadd.f32 %v254, %v285
      %288 = vrot.lane.b32.xlu0 %v220, 15
      %v289 = vpop.permute.xlu0 %288
      %290 = vrot.lane.b32.xlu0 %v222, 15
      %v291 = vpop.permute.xlu0 %290
      %vm292 = vcmp.lt.s32.totalorder %v229, 15
      %v293 = vsel %vm292, %v289, %v291
      %v294 = vsel %vm292, %v291, %v289
      %s295 = scalar_lea.vmem %s2, 4
      %v296 = vld [vmem:[%s295] sm:$0x3]
      %v298 = vlaneseq
      %v299 = vshrl.u32 %v298, 7
      %v300 = vsub.s32 0, %v299
      %v301 = vrot.slane %v296, %v300
      %v302 = vlaneseq
      %v303 = vshrl.u32 %v302, 7
      %v304 = vsub.s32 1, %v303
      %v305 = vrot.slane %v296, %v304
      %v308 = vmul.f32 %v294, %v301
      %v309 = vmul.f32 %v293, %v305
      %s310 = scalar_lea.vmem %s212, 8
      %v311 = vld [vmem:[%s310] sm:$0xf]
      %313 = vset.pattern.permute.xlu0 0
      %314 = vperm.xlu0 %313, %v311
      %v315 = vpop.permute.xlu0 %314
      %v317 = vmul.f32 %v308, %v315
      %v318 = vmul.f32 %v309, %v315
      %v319 = vadd.f32 %v286, %v317
      %v320 = vadd.f32 %v287, %v318
      %321 = vrot.lane.b32.xlu0 %v220, 1
      %v322 = vpop.permute.xlu0 %321
      %323 = vrot.lane.b32.xlu0 %v222, 1
      %v324 = vpop.permute.xlu0 %323
      %vm325 = vcmp.lt.s32.totalorder %v229, 1
      %v326 = vsel %vm325, %v322, %v324
      %v327 = vsel %vm325, %v324, %v322
      %s328 = scalar_lea.vmem %s2, 6
      %v329 = vld [vmem:[%s328] sm:$0x3]
      %v331 = vlaneseq
      %v332 = vshrl.u32 %v331, 7
      %v333 = vsub.s32 0, %v332
      %v334 = vrot.slane %v329, %v333
      %v335 = vlaneseq
      %v336 = vshrl.u32 %v335, 7
      %v337 = vsub.s32 1, %v336
      %v338 = vrot.slane %v329, %v337
      %v341 = vmul.f32 %v327, %v334
      %v342 = vmul.f32 %v326, %v338
      %s343 = scalar_lea.vmem %s212, 12
      %v344 = vld [vmem:[%s343] sm:$0xf]
      %346 = vset.pattern.permute.xlu0 0
      %347 = vperm.xlu0 %346, %v344
      %v348 = vpop.permute.xlu0 %347
      %v350 = vmul.f32 %v341, %v348
      %v351 = vmul.f32 %v342, %v348
      %v352 = vadd.f32 %v319, %v350
      %v353 = vadd.f32 %v320, %v351
      %s354 = scalar_lea.vmem %s212, 16
      %v355 = vld [vmem:[%s354] sm:$0xf]
      %357 = vset.pattern.permute.xlu0 0
      %358 = vperm.xlu0 %357, %v355
      %v359 = vpop.permute.xlu0 %358
      %v361 = vunpack.c.l.s4 839922192
      %v362 = vunpack.c.0.s8 %v361
      %v363 = vlaneseq
      %v364 = vshrl.u32 %v363, 7
      %v365 = vsub.s32 %v362, %v364
      %v366 = vrot.slane %v359, %v365
      %v368 = vmul.f32 %v220, %v366
      %v370 = vcombine.high %v368, %v368
      %v372 = vadd.f32 %v352, %v368
      %v373 = vadd.f32 %v353, %v370
      %374 = vrot.lane.b32.xlu0 %v220, 127
      %v375 = vpop.permute.xlu0 %374
      %376 = vrot.lane.b32.xlu0 %v222, 127
      %v377 = vpop.permute.xlu0 %376
      %vm378 = vcmp.lt.s32.totalorder %v229, 127
      %v379 = vsel %vm378, %v375, %v377
      %v380 = vsel %vm378, %v377, %v375
      %s381 = scalar_lea.vmem %s2, 10
      %v382 = vld [vmem:[%s381] sm:$0x3]
      %v384 = vlaneseq
      %v385 = vshrl.u32 %v384, 7
      %v386 = vsub.s32 0, %v385
      %v387 = vrot.slane %v382, %v386
      %v388 = vlaneseq
      %v389 = vshrl.u32 %v388, 7
      %v390 = vsub.s32 1, %v389
      %v391 = vrot.slane %v382, %v390
      %v394 = vmul.f32 %v379, %v387
      %v395 = vmul.f32 %v380, %v391
      %s396 = scalar_lea.vmem %s212, 20
      %v397 = vld [vmem:[%s396] sm:$0xf]
      %399 = vset.pattern.permute.xlu0 0
      %400 = vperm.xlu0 %399, %v397
      %v401 = vpop.permute.xlu0 %400
      %v403 = vmul.f32 %v394, %v401
      %v404 = vmul.f32 %v395, %v401
      %v405 = vadd.f32 %v372, %v403
      %v406 = vadd.f32 %v373, %v404
      %407 = vrot.lane.b32.xlu0 %v220, 113
      %v408 = vpop.permute.xlu0 %407
      %409 = vrot.lane.b32.xlu0 %v222, 113
      %v410 = vpop.permute.xlu0 %409
      %vm411 = vcmp.lt.s32.totalorder %v229, 113
      %v412 = vsel %vm411, %v408, %v410
      %v413 = vsel %vm411, %v410, %v408
      %s414 = scalar_lea.vmem %s2, 12
      %v415 = vld [vmem:[%s414] sm:$0x3]
      %v417 = vlaneseq
      %v418 = vshrl.u32 %v417, 7
      %v419 = vsub.s32 0, %v418
      %v420 = vrot.slane %v415, %v419
      %v421 = vlaneseq
      %v422 = vshrl.u32 %v421, 7
      %v423 = vsub.s32 1, %v422
      %v424 = vrot.slane %v415, %v423
      %v427 = vmul.f32 %v412, %v420
      %v428 = vmul.f32 %v413, %v424
      %s429 = scalar_lea.vmem %s212, 24
      %v430 = vld [vmem:[%s429] sm:$0xf]
      %432 = vset.pattern.permute.xlu0 0
      %433 = vperm.xlu0 %432, %v430
      %v434 = vpop.permute.xlu0 %433
      %v436 = vmul.f32 %v427, %v434
      %v437 = vmul.f32 %v428, %v434
      %v438 = vadd.f32 %v405, %v436
      %v439 = vadd.f32 %v406, %v437
      %440 = vrot.lane.b32.xlu0 %v220, 112
      %v441 = vpop.permute.xlu0 %440
      %442 = vrot.lane.b32.xlu0 %v222, 112
      %v443 = vpop.permute.xlu0 %442
      %vm444 = vcmp.lt.s32.totalorder %v229, 112
      %v445 = vsel %vm444, %v441, %v443
      %v446 = vsel %vm444, %v443, %v441
      %s447 = scalar_lea.vmem %s2, 14
      %v448 = vld [vmem:[%s447] sm:$0x3]
      %v450 = vlaneseq
      %v451 = vshrl.u32 %v450, 7
      %v452 = vsub.s32 0, %v451
      %v453 = vrot.slane %v448, %v452
      %v454 = vlaneseq
      %v455 = vshrl.u32 %v454, 7
      %v456 = vsub.s32 1, %v455
      %v457 = vrot.slane %v448, %v456
      %v460 = vmul.f32 %v445, %v453
      %v461 = vmul.f32 %v446, %v457
      %s462 = scalar_lea.vmem %s212, 28
      %v463 = vld [vmem:[%s462] sm:$0xf]
      %465 = vset.pattern.permute.xlu0 0
      %466 = vperm.xlu0 %465, %v463
      %v467 = vpop.permute.xlu0 %466
      %v469 = vmul.f32 %v460, %v467
      %v470 = vmul.f32 %v461, %v467
      %v471 = vadd.f32 %v438, %v469
      %v472 = vadd.f32 %v439, %v470
      %473 = vrot.lane.b32.xlu0 %v220, 111
      %v474 = vpop.permute.xlu0 %473
      %475 = vrot.lane.b32.xlu0 %v222, 111
      %v476 = vpop.permute.xlu0 %475
      %vm477 = vcmp.lt.s32.totalorder %v229, 111
      %v478 = vsel %vm477, %v474, %v476
      %v479 = vsel %vm477, %v476, %v474
      %s480 = scalar_lea.vmem %s2, 16
      %v481 = vld [vmem:[%s480] sm:$0x3]
      %v483 = vlaneseq
      %v484 = vshrl.u32 %v483, 7
      %v485 = vsub.s32 0, %v484
      %v486 = vrot.slane %v481, %v485
      %v487 = vlaneseq
      %v488 = vshrl.u32 %v487, 7
      %v489 = vsub.s32 1, %v488
      %v490 = vrot.slane %v481, %v489
      %v493 = vmul.f32 %v478, %v486
      %v494 = vmul.f32 %v479, %v490
      %s495 = scalar_lea.vmem %s212, 32
      %v496 = vld [vmem:[%s495] sm:$0xf]
      %498 = vset.pattern.permute.xlu0 0
      %499 = vperm.xlu0 %498, %v496
      %v500 = vpop.permute.xlu0 %499
      %v502 = vmul.f32 %v493, %v500
      %v503 = vmul.f32 %v494, %v500
      %v504 = vadd.f32 %v471, %v502
      %v505 = vadd.f32 %v472, %v503
      %vm506 = vcmask 1043456
      %v507 = vsel %vm506, %v504, 0.0
      %v508 = vsel %vm506, %v505, 0.0
      %v509 = vadd.f32 %v507, %v508
      %510 = vadd.xlane.f32.xlu0 %v509
      %v511 = vpop.xlane.xlu0 %510
      %v512 = vmul.f32 %v511, 0.00390625
      %v513 = vsub.f32 %v504, %v512
      %v514 = vsub.f32 %v505, %v512
      %v515 = vmul.f32 %v513, %v513
      %v516 = vmul.f32 %v514, %v514
      %v517 = vsel %vm506, %v515, 0.0
      %v518 = vsel %vm506, %v516, 0.0
      %v519 = vadd.f32 %v517, %v518
      %520 = vadd.xlane.f32.xlu0 %v519
      %v521 = vpop.xlane.xlu0 %520
      %vm522 = vcmask 3072
      %523 = vst.msk [vmem:[%s219] sm:$0xf] %vm522, %v512
      %vm524 = vcmask 11272
      %525 = vst.msk [vmem:[%s219] sm:$0xf] %vm524, %v521
      %p526 = scmp.lt.s32.totalorder %s18, 1
      %s527 = scalar_select %p526, %s18, 1
      %p528 = scmp.lt.s32.totalorder %s19, 0
      %s529 = scalar_select %p528, %s19, 0
      %s530 = sadd.s32 %s529, %s527
      %s531 = smul.addr %s530, 4
      %s532 = scalar_lea.vmem %s3, %s531
      // Predicated region
      $region33: #{basic_sep_conv.2} parent=31 // pred_check
        %p533 = pneg %p121
      $region34: #{basic_sep_conv.2} parent=31 // pred_check_branch
        %535 = sbr.rel (%p533) target = $region36
      $region35: #{basic_sep_conv.2} parent=31 // pred_region
        _
      $region36: #{basic_sep_conv.2} parent=31 // pred_fallthru
        _
    $region32: #{basic_sep_conv.2} parent=5 // pred_fallthru
      _
    %p536 = scmp.le.s32.totalorder 2, %s9
    // Predicated region
    $region37: #{basic_sep_conv.2} parent=5 // pred_check
      %p537 = pneg %p536
    $region38: #{basic_sep_conv.2} parent=5 // pred_check_branch
      %539 = sbr.rel (%p537) target = $region40
    $region39: #{basic_sep_conv.2} parent=5 // pred_region
      %s540 = ssub.s32 %s9, 2
      // Predicated region
      $region41: #{basic_sep_conv.2} parent=39 // pred_check
        %p541 = pneg %p127
      $region42: #{basic_sep_conv.2} parent=39 // pred_check_branch
        %543 = sbr.rel (%p541) target = $region44
      $region43: #{basic_sep_conv.2} parent=39 // pred_region
        %p544 = scmp.lt.s32.totalorder %s20, 1
        %s545 = scalar_select %p544, %s20, 1
        %p546 = scmp.lt.s32.totalorder %s21, 0
        %s547 = scalar_select %p546, %s21, 0
        %s548 = sadd.s32 %s547, %s545
        %s549 = smul.addr %s548, 4
        %s550 = scalar_lea.vmem %s3, %s549
      $region44: #{basic_sep_conv.2} parent=39 // pred_fallthru
        _
    $region40: #{basic_sep_conv.2} parent=5 // pred_fallthru
      _
  $region6: #{basic_sep_conv.2} parent=0 // loop_footer
    %s13 = sadd.s32 1, %s9
  $region7: #{basic_sep_conv.2} parent=0 // loop_footer_branch
    %8 = sbr.rel target = $region3
  $region8: #{basic_sep_conv.2} parent=0 // loop_exit
    _

// kernel: basic_sep_conv.3
$region0: #{basic_sep_conv.3}
  #allocation0 [shape = 'u32[]', space=smem, size = 0x4, offset = 0x4, fixed_abs, tag = 'smem constant byte address 0x4 - core index']
  #allocation1 [shape = 'u32[144,128]{1,0:T(1,128)}', space=vmem, size = 0x12000, scoped, tag = 'internal scratch']
  %s0 = inlined_call_operand.vmem [shape: f32[2,4,256], index: 0, kind: input, shape index: {}]
  %s1 = inlined_call_operand.vmem [shape: f32[9,4,1], index: 1, kind: input, shape index: {}]
  %s2 = inlined_call_operand.vmem [shape: f32[9,1,256], index: 2, kind: input, shape index: {}]
  %s3 = inlined_call_operand.vmem [shape: f32[4,1], index: 3, kind: input, shape index: {}]
  %s4 = inlined_call_operand.vmem [shape: f32[4,1], index: 4, kind: input, shape index: {}]
  %s5 = inlined_call_operand.vmem [shape: f32[2,4,256], index: 5, kind: output, shape index: {}]
  %s6 = sld [smem:[#allocation0]]
  $region53: #{basic_sep_conv.3} parent=0
    _
  %s8 = ssub.s32 1, %s6
  %s9 = scalar_select 0, %s8, %s6
  loop: start=0, step=1, limit=4
  $region2: #{basic_sep_conv.3} parent=0 // loop_pre_header
    _
  $region3: #{basic_sep_conv.3} parent=0 // loop_header
    %s11 = sphi 0, %s15
    %p12 = scmp.ge.s32.totalorder %s11, 4
    %s18 = sphi 0, %s30
    %s19 = sphi 0, %s26
    %s20 = sphi 0, %s18
    %s21 = sphi 0, %s19
    %s22 = sphi 0, %s20
    %s23 = sphi 0, %s21
    %s35 = sphi 0, %s37
    %s38 = sphi 0, %s35
    %s39 = sphi 0, %s38
    %s55 = sphi 0, %s39
    %s61 = sphi 0, %s63
    %s64 = sphi 0, %s61
    %s65 = sphi 0, %s64
    %s81 = sphi 0, %s65
    %s85 = sphi 0, %s85
    %s87 = sphi 0, %s85
    %s88 = sphi 0, %s87
    %s102 = sphi 0, %s88
    %s108 = sphi 0, %s110
    %s111 = sphi 0, %s108
    %s112 = sphi 0, %s111
    %s128 = sphi 0, %s112
    %s134 = sphi 0, %s136
    %s137 = sphi 0, %s134
    %s138 = sphi 0, %s137
    %s154 = sphi 0, %s138
    %s162 = sphi 0, %s164
    %s165 = sphi 0, %s162
    %s166 = sphi 0, %s165
    %s182 = sphi 0, %s166
  $region4: #{basic_sep_conv.3} parent=0 // loop_header_branch
    %14 = sbr.rel (%p12) target = $region8
  $region5: #{basic_sep_conv.3} parent=0 // loop_body
    %s16 = ssub.s32 %s11, 1
    %s17 = ssub.s32 %s11, 2
    %s24 = sadd.s32 1, %s19
    %p25 = scmp.ge.s32.totalorder %s24, 1
    %s26 = scalar_select %p25, 0, %s24
    %s27 = sadd.s32 1, %s18
    %s28 = scalar_select %p25, %s27, %s18
    %p29 = scmp.ge.s32.totalorder %s28, 2
    %s30 = scalar_select %p29, 0, %s28
    %s31 = ssub.s32 %s18, %s30
    %s32 = ssub.s32 %s19, %s26
    %s33 = sor.u32 %s31, %s32
    %p34 = scmp.eq.s32.totalorder %s33, 0
    %s36 = sadd.s32 %s35, 1
    %s37 = scalar_select %p34, %s35, %s36
    %p40 = pneg %p34
    %p41 = scmp.eq.s32.totalorder %s11, 1
    %p42 = por %p40, %p41
    %p43 = scmp.ne.s32.totalorder %s35, %s38
    %p44 = scmp.eq.s32.totalorder %s11, 0
    %p45 = por %p43, %p44
    %p46 = scmp.ne.s32.totalorder %s35, %s38
    %p47 = scmp.eq.s32.totalorder %s16, 1
    %p48 = por %p46, %p47
    %p49 = scmp.ne.s32.totalorder %s38, %s39
    %p50 = scmp.eq.s32.totalorder %s16, 0
    %p51 = por %p49, %p50
    %p52 = scmp.ne.s32.totalorder %s38, %s39
    %p53 = scmp.eq.s32.totalorder %s17, 1
    %p54 = por %p52, %p53
    %p56 = scmp.ne.s32.totalorder %s39, %s55
    %p57 = scmp.eq.s32.totalorder %s17, 0
    %p58 = por %p56, %p57
    %s59 = ssub.s32 %s19, %s26
    %p60 = scmp.eq.s32.totalorder %s59, 0
    %s62 = sadd.s32 %s61, 1
    %s63 = scalar_select %p60, %s61, %s62
    %p66 = pneg %p60
    %p67 = scmp.eq.s32.totalorder %s11, 1
    %p68 = por %p66, %p67
    %p69 = scmp.ne.s32.totalorder %s61, %s64
    %p70 = scmp.eq.s32.totalorder %s11, 0
    %p71 = por %p69, %p70
    %p72 = scmp.ne.s32.totalorder %s61, %s64
    %p73 = scmp.eq.s32.totalorder %s16, 1
    %p74 = por %p72, %p73
    %p75 = scmp.ne.s32.totalorder %s64, %s65
    %p76 = scmp.eq.s32.totalorder %s16, 0
    %p77 = por %p75, %p76
    %p78 = scmp.ne.s32.totalorder %s64, %s65
    %p79 = scmp.eq.s32.totalorder %s17, 1
    %p80 = por %p78, %p79
    %p82 = scmp.ne.s32.totalorder %s65, %s81
    %p83 = scmp.eq.s32.totalorder %s17, 0
    %p84 = por %p82, %p83
    %s86 = sadd.s32 %s85, 1
    %p89 = scmp.eq.s32.totalorder %s11, 1
    %p90 = scmp.ne.s32.totalorder %s85, %s87
    %p91 = scmp.eq.s32.totalorder %s11, 0
    %p92 = por %p90, %p91
    %p93 = scmp.ne.s32.totalorder %s85, %s87
    %p94 = scmp.eq.s32.totalorder %s16, 1
    %p95 = por %p93, %p94
    %p96 = scmp.ne.s32.totalorder %s87, %s88
    %p97 = scmp.eq.s32.totalorder %s16, 0
    %p98 = por %p96, %p97
    %p99 = scmp.ne.s32.totalorder %s87, %s88
    %p100 = scmp.eq.s32.totalorder %s17, 1
    %p101 = por %p99, %p100
    %p103 = scmp.ne.s32.totalorder %s88, %s102
    %p104 = scmp.eq.s32.totalorder %s17, 0
    %p105 = por %p103, %p104
    %s106 = ssub.s32 %s19, %s26
    %p107 = scmp.eq.s32.totalorder %s106, 0
    %s109 = sadd.s32 %s108, 1
    %s110 = scalar_select %p107, %s108, %s109
    %p113 = pneg %p107
    %p114 = scmp.eq.s32.totalorder %s11, 1
    %p115 = por %p113, %p114
    %p116 = scmp.ne.s32.totalorder %s108, %s111
    %p117 = scmp.eq.s32.totalorder %s11, 0
    %p118 = por %p116, %p117
    %p119 = scmp.ne.s32.totalorder %s108, %s111
    %p120 = scmp.eq.s32.totalorder %s16, 1
    %p121 = por %p119, %p120
    %p122 = scmp.ne.s32.totalorder %s111, %s112
    %p123 = scmp.eq.s32.totalorder %s16, 0
    %p124 = por %p122, %p123
    %p125 = scmp.ne.s32.totalorder %s111, %s112
    %p126 = scmp.eq.s32.totalorder %s17, 1
    %p127 = por %p125, %p126
    %p129 = scmp.ne.s32.totalorder %s112, %s128
    %p130 = scmp.eq.s32.totalorder %s17, 0
    %p131 = por %p129, %p130
    %s132 = ssub.s32 %s19, %s26
    %p133 = scmp.eq.s32.totalorder %s132, 0
    %s135 = sadd.s32 %s134, 1
    %s136 = scalar_select %p133, %s134, %s135
    %p139 = pneg %p133
    %p140 = scmp.eq.s32.totalorder %s11, 1
    %p141 = por %p139, %p140
    %p142 = scmp.ne.s32.totalorder %s134, %s137
    %p143 = scmp.eq.s32.totalorder %s11, 0
    %p144 = por %p142, %p143
    %p145 = scmp.ne.s32.totalorder %s134, %s137
    %p146 = scmp.eq.s32.totalorder %s16, 1
    %p147 = por %p145, %p146
    %p148 = scmp.ne.s32.totalorder %s137, %s138
    %p149 = scmp.eq.s32.totalorder %s16, 0
    %p150 = por %p148, %p149
    %p151 = scmp.ne.s32.totalorder %s137, %s138
    %p152 = scmp.eq.s32.totalorder %s17, 1
    %p153 = por %p151, %p152
    %p155 = scmp.ne.s32.totalorder %s138, %s154
    %p156 = scmp.eq.s32.totalorder %s17, 0
    %p157 = por %p155, %p156
    %s158 = ssub.s32 %s18, %s30
    %s159 = ssub.s32 %s19, %s26
    %s160 = sor.u32 %s158, %s159
    %p161 = scmp.eq.s32.totalorder %s160, 0
    %s163 = sadd.s32 %s162, 1
    %s164 = scalar_select %p161, %s162, %s163
    %p167 = pneg %p161
    %p168 = scmp.eq.s32.totalorder %s11, 1
    %p169 = por %p167, %p168
    %p170 = scmp.ne.s32.totalorder %s162, %s165
    %p171 = scmp.eq.s32.totalorder %s11, 0
    %p172 = por %p170, %p171
    %p173 = scmp.ne.s32.totalorder %s162, %s165
    %p174 = scmp.eq.s32.totalorder %s16, 1
    %p175 = por %p173, %p174
    %p176 = scmp.ne.s32.totalorder %s165, %s166
    %p177 = scmp.eq.s32.totalorder %s16, 0
    %p178 = por %p176, %p177
    %p179 = scmp.ne.s32.totalorder %s165, %s166
    %p180 = scmp.eq.s32.totalorder %s17, 1
    %p181 = por %p179, %p180
    %p183 = scmp.ne.s32.totalorder %s166, %s182
    %p184 = scmp.eq.s32.totalorder %s17, 0
    %p185 = por %p183, %p184
    %p186 = scmp.le.s32.totalorder 1, %s11
    %p187 = scmp.lt.s32.totalorder %s11, 3
    %p188 = pnand %p186, %p187
    %p189 = pneg %p188
    // Predicated region
    $region9: #{basic_sep_conv.3} parent=5 // pred_check
      _
    $region10: #{basic_sep_conv.3} parent=5 // pred_check_branch
      %191 = sbr.rel (%p188) target = $region12
    $region11: #{basic_sep_conv.3} parent=5 // pred_region
      %s192 = ssub.s32 %s11, 1
      // Predicated region
      $region13: #{basic_sep_conv.3} parent=11 // pred_check
        %p193 = pneg %p77
      $region14: #{basic_sep_conv.3} parent=11 // pred_check_branch
        %195 = sbr.rel (%p193) target = $region16
      $region15: #{basic_sep_conv.3} parent=11 // pred_region
        %p196 = scmp.lt.s32.totalorder %s21, 0
        %s197 = scalar_select %p196, %s21, 0
        %s198 = smul.addr %s197, 4
        %s199 = scalar_lea.vmem %s1, %s198
      $region16: #{basic_sep_conv.3} parent=11 // pred_fallthru
        _
      // Predicated region
      $region17: #{basic_sep_conv.3} parent=11 // pred_check
        %p200 = pneg %p98
      $region18: #{basic_sep_conv.3} parent=11 // pred_check_branch
        %202 = sbr.rel (%p200) target = $region20
      $region19: #{basic_sep_conv.3} parent=11 // pred_region
        _
      $region20: #{basic_sep_conv.3} parent=11 // pred_fallthru
        _
      // Predicated region
      $region21: #{basic_sep_conv.3} parent=11 // pred_check
        %p203 = pneg %p124
      $region22: #{basic_sep_conv.3} parent=11 // pred_check_branch
        %205 = sbr.rel (%p203) target = $region24
      $region23: #{basic_sep_conv.3} parent=11 // pred_region
        %p206 = scmp.lt.s32.totalorder %s21, 0
        %s207 = scalar_select %p206, %s21, 0
        %s208 = smul.addr %s207, 4
        %s209 = scalar_lea.vmem %s3, %s208
      $region24: #{basic_sep_conv.3} parent=11 // pred_fallthru
        _
      // Predicated region
      $region25: #{basic_sep_conv.3} parent=11 // pred_check
        %p210 = pneg %p150
      $region26: #{basic_sep_conv.3} parent=11 // pred_check_branch
        %212 = sbr.rel (%p210) target = $region28
      $region27: #{basic_sep_conv.3} parent=11 // pred_region
        %p213 = scmp.lt.s32.totalorder %s21, 0
        %s214 = scalar_select %p213, %s21, 0
        %s215 = smul.addr %s214, 4
        %s216 = scalar_lea.vmem %s4, %s215
      $region28: #{basic_sep_conv.3} parent=11 // pred_fallthru
        _
    $region12: #{basic_sep_conv.3} parent=5 // pred_fallthru
      _
    %p217 = scmp.lt.s32.totalorder %s11, 2
    // Predicated region
    $region29: #{basic_sep_conv.3} parent=5 // pred_check
      %p218 = pneg %p217
    $region30: #{basic_sep_conv.3} parent=5 // pred_check_branch
      %220 = sbr.rel (%p218) target = $region32
    $region31: #{basic_sep_conv.3} parent=5 // pred_region
      // Predicated region
      $region33: #{basic_sep_conv.3} parent=31 // pred_check
        %p221 = pneg %p45
      $region34: #{basic_sep_conv.3} parent=31 // pred_check_branch
        %223 = sbr.rel (%p221) target = $region36
      $region35: #{basic_sep_conv.3} parent=31 // pred_region
        %p224 = scmp.lt.s32.totalorder %s18, 1
        %s225 = scalar_select %p224, %s18, 1
        %p226 = scmp.lt.s32.totalorder %s19, 0
        %s227 = scalar_select %p226, %s19, 0
        %s228 = smul.addr %s227, 2
        %s229 = smul.addr %s225, 2
        %s230 = sadd.s32 %s228, %s229
        %s231 = smul.addr %s230, 4
        %s232 = scalar_lea.vmem %s0, %s231
      $region36: #{basic_sep_conv.3} parent=31 // pred_fallthru
        _
    $region32: #{basic_sep_conv.3} parent=5 // pred_fallthru
      _
    %p233 = scmp.le.s32.totalorder 1, %s11
    %p234 = scmp.lt.s32.totalorder %s11, 3
    %p235 = pnand %p233, %p234
    %p236 = pneg %p235
    // Predicated region
    $region37: #{basic_sep_conv.3} parent=5 // pred_check
      _
    $region38: #{basic_sep_conv.3} parent=5 // pred_check_branch
      %238 = sbr.rel (%p235) target = $region40
    $region39: #{basic_sep_conv.3} parent=5 // pred_region
      %s239 = ssub.s32 %s11, 1
      %p240 = scmp.lt.s32.totalorder %s20, 1
      %s241 = scalar_select %p240, %s20, 1
      %p242 = scmp.lt.s32.totalorder %s21, 0
      %s243 = scalar_select %p242, %s21, 0
      %s244 = smul.addr %s243, 2
      %s245 = smul.addr %s241, 2
      %s246 = sadd.s32 %s244, %s245
      %s247 = smul.addr %s246, 4
      %s248 = scalar_lea.vmem %s0, %s247
      %p249 = pneg %p51
      %p250 = pneg %p48
      %p251 = scmp.lt.s32.totalorder %s21, 0
      %s252 = scalar_select %p251, %s21, 0
      %s253 = smul.addr %s252, 4
      %s254 = scalar_lea.vmem %s1, %s253
      %p255 = pneg %p77
      %p256 = pneg %p74
      %p257 = pneg %p98
      %p258 = pneg %p95
      %p259 = scmp.lt.s32.totalorder %s21, 0
      %s260 = scalar_select %p259, %s21, 0
      %s261 = smul.addr %s260, 4
      %s262 = scalar_lea.vmem %s3, %s261
      %p263 = pneg %p124
      %p264 = pneg %p121
      %p265 = scmp.lt.s32.totalorder %s21, 0
      %s266 = scalar_select %p265, %s21, 0
      %s267 = smul.addr %s266, 4
      %s268 = scalar_lea.vmem %s4, %s267
      %p269 = pneg %p150
      %p270 = pneg %p147
      %p271 = pneg %p178
      %p272 = pneg %p175
      %p273 = scmp.lt.s32.totalorder %s20, 1
      %s274 = scalar_select %p273, %s20, 1
      %p275 = scmp.lt.s32.totalorder %s21, 0
      %s276 = scalar_select %p275, %s21, 0
      %s277 = smul.addr %s276, 2
      %s278 = smul.addr %s274, 2
      %s279 = sadd.s32 %s277, %s278
      %s280 = smul.addr %s279, 4
      %s281 = scalar_lea.vmem %s5, %s280
      %p282 = scmp.lt.s32.totalorder %s20, 1
      %s283 = scalar_select %p282, %s20, 1
      %p284 = scmp.lt.s32.totalorder %s21, 0
      %s285 = scalar_select %p284, %s21, 0
      %s286 = smul.addr %s285, 2
      %s287 = smul.addr %s283, 2
      %s288 = sadd.s32 %s286, %s287
      %s289 = smul.addr %s288, 4
      %s290 = scalar_lea.vmem %s0, %s289
      %p291 = scmp.lt.s32.totalorder %s21, 0
      %s292 = scalar_select %p291, %s21, 0
      %s293 = smul.addr %s292, 4
      %s294 = scalar_lea.vmem %s1, %s293
      %p295 = scmp.lt.s32.totalorder %s21, 0
      %s296 = scalar_select %p295, %s21, 0
      %s297 = smul.addr %s296, 4
      %s298 = scalar_lea.vmem %s3, %s297
      %p299 = scmp.lt.s32.totalorder %s21, 0
      %s300 = scalar_select %p299, %s21, 0
      %s301 = smul.addr %s300, 4
      %s302 = scalar_lea.vmem %s4, %s301
      %p303 = scmp.lt.s32.totalorder %s20, 1
      %s304 = scalar_select %p303, %s20, 1
      %p305 = scmp.lt.s32.totalorder %s21, 0
      %s306 = scalar_select %p305, %s21, 0
      %s307 = smul.addr %s306, 2
      %s308 = smul.addr %s304, 2
      %s309 = sadd.s32 %s307, %s308
      %s310 = smul.addr %s309, 4
      %s311 = scalar_lea.vmem %s5, %s310
      %v312 = vld [vmem:[%s290] sm:$0xff]
      %v314 = vcombine.high %v312, %v312
      %316 = vrot.lane.b32.xlu0 %v312, 17
      %v317 = vpop.permute.xlu0 %316
      %318 = vrot.lane.b32.xlu0 %v314, 17
      %v319 = vpop.permute.xlu0 %318
      %v320 = vlaneseq
      %v321 = vand.u32 %v320, 127
      %vm322 = vcmp.lt.s32.totalorder %v321, 17
      %v323 = vsel %vm322, %v317, %v319
      %v324 = vsel %vm322, %v319, %v317
      %v325 = vld [vmem:[%s2] sm:$0x3]
      %v327 = vlaneseq
      %v328 = vshrl.u32 %v327, 7
      %v329 = vsub.s32 0, %v328
      %v330 = vrot.slane %v325, %v329
      %v331 = vlaneseq
      %v332 = vshrl.u32 %v331, 7
      %v333 = vsub.s32 1, %v332
      %v334 = vrot.slane %v325, %v333
      %v337 = vmul.f32 %v324, %v330
      %v338 = vmul.f32 %v323, %v334
      %v339 = vld [vmem:[%s294] sm:$0xf]
      %341 = vset.pattern.permute.xlu0 0
      %342 = vperm.xlu0 %341, %v339
      %v343 = vpop.permute.xlu0 %342
      %v345 = vmul.f32 %v337, %v343
      %v346 = vmul.f32 %v338, %v343
      %347 = vrot.lane.b32.xlu0 %v312, 16
      %v348 = vpop.permute.xlu0 %347
      %349 = vrot.lane.b32.xlu0 %v314, 16
      %v350 = vpop.permute.xlu0 %349
      %vm351 = vcmp.lt.s32.totalorder %v321, 16
      %v352 = vsel %vm351, %v348, %v350
      %v353 = vsel %vm351, %v350, %v348
      %s354 = scalar_lea.vmem %s2, 2
      %v355 = vld [vmem:[%s354] sm:$0x3]
      %v357 = vlaneseq
      %v358 = vshrl.u32 %v357, 7
      %v359 = vsub.s32 0, %v358
      %v360 = vrot.slane %v355, %v359
      %v361 = vlaneseq
      %v362 = vshrl.u32 %v361, 7
      %v363 = vsub.s32 1, %v362
      %v364 = vrot.slane %v355, %v363
      %v367 = vmul.f32 %v353, %v360
      %v368 = vmul.f32 %v352, %v364
      %s369 = scalar_lea.vmem %s294, 4
      %v370 = vld [vmem:[%s369] sm:$0xf]
      %372 = vset.pattern.permute.xlu0 0
      %373 = vperm.xlu0 %372, %v370
      %v374 = vpop.permute.xlu0 %373
      %v376 = vmul.f32 %v367, %v374
      %v377 = vmul.f32 %v368, %v374
      %v378 = vadd.f32 %v345, %v376
      %v379 = vadd.f32 %v346, %v377
      %380 = vrot.lane.b32.xlu0 %v312, 15
      %v381 = vpop.permute.xlu0 %380
      %382 = vrot.lane.b32.xlu0 %v314, 15
      %v383 = vpop.permute.xlu0 %382
      %vm384 = vcmp.lt.s32.totalorder %v321, 15
      %v385 = vsel %vm384, %v381, %v383
      %v386 = vsel %vm384, %v383, %v381
      %s387 = scalar_lea.vmem %s2, 4
      %v388 = vld [vmem:[%s387] sm:$0x3]
      %v390 = vlaneseq
      %v391 = vshrl.u32 %v390, 7
      %v392 = vsub.s32 0, %v391
      %v393 = vrot.slane %v388, %v392
      %v394 = vlaneseq
      %v395 = vshrl.u32 %v394, 7
      %v396 = vsub.s32 1, %v395
      %v397 = vrot.slane %v388, %v396
      %v400 = vmul.f32 %v386, %v393
      %v401 = vmul.f32 %v385, %v397
      %s402 = scalar_lea.vmem %s294, 8
      %v403 = vld [vmem:[%s402] sm:$0xf]
      %405 = vset.pattern.permute.xlu0 0
      %406 = vperm.xlu0 %405, %v403
      %v407 = vpop.permute.xlu0 %406
      %v409 = vmul.f32 %v400, %v407
      %v410 = vmul.f32 %v401, %v407
      %v411 = vadd.f32 %v378, %v409
      %v412 = vadd.f32 %v379, %v410
      %413 = vrot.lane.b32.xlu0 %v312, 1
      %v414 = vpop.permute.xlu0 %413
      %415 = vrot.lane.b32.xlu0 %v314, 1
      %v416 = vpop.permute.xlu0 %415
      %vm417 = vcmp.lt.s32.totalorder %v321, 1
      %v418 = vsel %vm417, %v414, %v416
      %v419 = vsel %vm417, %v416, %v414
      %s420 = scalar_lea.vmem %s2, 6
      %v421 = vld [vmem:[%s420] sm:$0x3]
      %v423 = vlaneseq
      %v424 = vshrl.u32 %v423, 7
      %v425 = vsub.s32 0, %v424
      %v426 = vrot.slane %v421, %v425
      %v427 = vlaneseq
      %v428 = vshrl.u32 %v427, 7
      %v429 = vsub.s32 1, %v428
      %v430 = vrot.slane %v421, %v429
      %v433 = vmul.f32 %v419, %v426
      %v434 = vmul.f32 %v418, %v430
      %s435 = scalar_lea.vmem %s294, 12
      %v436 = vld [vmem:[%s435] sm:$0xf]
      %438 = vset.pattern.permute.xlu0 0
      %439 = vperm.xlu0 %438, %v436
      %v440 = vpop.permute.xlu0 %439
      %v442 = vmul.f32 %v433, %v440
      %v443 = vmul.f32 %v434, %v440
      %v444 = vadd.f32 %v411, %v442
      %v445 = vadd.f32 %v412, %v443
      %s446 = scalar_lea.vmem %s294, 16
      %v447 = vld [vmem:[%s446] sm:$0xf]
      %449 = vset.pattern.permute.xlu0 0
      %450 = vperm.xlu0 %449, %v447
      %v451 = vpop.permute.xlu0 %450
      %v453 = vunpack.c.l.s4 839922192
      %v454 = vunpack.c.0.s8 %v453
      %v455 = vlaneseq
      %v456 = vshrl.u32 %v455, 7
      %v457 = vsub.s32 %v454, %v456
      %v458 = vrot.slane %v451, %v457
      %v460 = vmul.f32 %v312, %v458
      %v462 = vcombine.high %v460, %v460
      %v464 = vadd.f32 %v444, %v460
      %v465 = vadd.f32 %v445, %v462
      %466 = vrot.lane.b32.xlu0 %v312, 127
      %v467 = vpop.permute.xlu0 %466
      %468 = vrot.lane.b32.xlu0 %v314, 127
      %v469 = vpop.permute.xlu0 %468
      %vm470 = vcmp.lt.s32.totalorder %v321, 127
      %v471 = vsel %vm470, %v467, %v469
      %v472 = vsel %vm470, %v469, %v467
      %s473 = scalar_lea.vmem %s2, 10
      %v474 = vld [vmem:[%s473] sm:$0x3]
      %v476 = vlaneseq
      %v477 = vshrl.u32 %v476, 7
      %v478 = vsub.s32 0, %v477
      %v479 = vrot.slane %v474, %v478
      %v480 = vlaneseq
      %v481 = vshrl.u32 %v480, 7
      %v482 = vsub.s32 1, %v481
      %v483 = vrot.slane %v474, %v482
      %v486 = vmul.f32 %v471, %v479
      %v487 = vmul.f32 %v472, %v483
      %s488 = scalar_lea.vmem %s294, 20
      %v489 = vld [vmem:[%s488] sm:$0xf]
      %491 = vset.pattern.permute.xlu0 0
      %492 = vperm.xlu0 %491, %v489
      %v493 = vpop.permute.xlu0 %492
      %v495 = vmul.f32 %v486, %v493
      %v496 = vmul.f32 %v487, %v493
      %v497 = vadd.f32 %v464, %v495
      %v498 = vadd.f32 %v465, %v496
      %499 = vrot.lane.b32.xlu0 %v312, 113
      %v500 = vpop.permute.xlu0 %499
      %501 = vrot.lane.b32.xlu0 %v314, 113
      %v502 = vpop.permute.xlu0 %501
      %vm503 = vcmp.lt.s32.totalorder %v321, 113
      %v504 = vsel %vm503, %v500, %v502
      %v505 = vsel %vm503, %v502, %v500
      %s506 = scalar_lea.vmem %s2, 12
      %v507 = vld [vmem:[%s506] sm:$0x3]
      %v509 = vlaneseq
      %v510 = vshrl.u32 %v509, 7
      %v511 = vsub.s32 0, %v510
      %v512 = vrot.slane %v507, %v511
      %v513 = vlaneseq
      %v514 = vshrl.u32 %v513, 7
      %v515 = vsub.s32 1, %v514
      %v516 = vrot.slane %v507, %v515
      %v519 = vmul.f32 %v504, %v512
      %v520 = vmul.f32 %v505, %v516
      %s521 = scalar_lea.vmem %s294, 24
      %v522 = vld [vmem:[%s521] sm:$0xf]
      %524 = vset.pattern.permute.xlu0 0
      %525 = vperm.xlu0 %524, %v522
      %v526 = vpop.permute.xlu0 %525
      %v528 = vmul.f32 %v519, %v526
      %v529 = vmul.f32 %v520, %v526
      %v530 = vadd.f32 %v497, %v528
      %v531 = vadd.f32 %v498, %v529
      %532 = vrot.lane.b32.xlu0 %v312, 112
      %v533 = vpop.permute.xlu0 %532
      %534 = vrot.lane.b32.xlu0 %v314, 112
      %v535 = vpop.permute.xlu0 %534
      %vm536 = vcmp.lt.s32.totalorder %v321, 112
      %v537 = vsel %vm536, %v533, %v535
      %v538 = vsel %vm536, %v535, %v533
      %s539 = scalar_lea.vmem %s2, 14
      %v540 = vld [vmem:[%s539] sm:$0x3]
      %v542 = vlaneseq
      %v543 = vshrl.u32 %v542, 7
      %v544 = vsub.s32 0, %v543
      %v545 = vrot.slane %v540, %v544
      %v546 = vlaneseq
      %v547 = vshrl.u32 %v546, 7
      %v548 = vsub.s32 1, %v547
      %v549 = vrot.slane %v540, %v548
      %v552 = vmul.f32 %v537, %v545
      %v553 = vmul.f32 %v538, %v549
      %s554 = scalar_lea.vmem %s294, 28
      %v555 = vld [vmem:[%s554] sm:$0xf]
      %557 = vset.pattern.permute.xlu0 0
      %558 = vperm.xlu0 %557, %v555
      %v559 = vpop.permute.xlu0 %558
      %v561 = vmul.f32 %v552, %v559
      %v562 = vmul.f32 %v553, %v559
      %v563 = vadd.f32 %v530, %v561
      %v564 = vadd.f32 %v531, %v562
      %565 = vrot.lane.b32.xlu0 %v312, 111
      %v566 = vpop.permute.xlu0 %565
      %567 = vrot.lane.b32.xlu0 %v314, 111
      %v568 = vpop.permute.xlu0 %567
      %vm569 = vcmp.lt.s32.totalorder %v321, 111
      %v570 = vsel %vm569, %v566, %v568
      %v571 = vsel %vm569, %v568, %v566
      %s572 = scalar_lea.vmem %s2, 16
      %v573 = vld [vmem:[%s572] sm:$0x3]
      %v575 = vlaneseq
      %v576 = vshrl.u32 %v575, 7
      %v577 = vsub.s32 0, %v576
      %v578 = vrot.slane %v573, %v577
      %v579 = vlaneseq
      %v580 = vshrl.u32 %v579, 7
      %v581 = vsub.s32 1, %v580
      %v582 = vrot.slane %v573, %v581
      %v585 = vmul.f32 %v570, %v578
      %v586 = vmul.f32 %v571, %v582
      %s587 = scalar_lea.vmem %s294, 32
      %v588 = vld [vmem:[%s587] sm:$0xf]
      %590 = vset.pattern.permute.xlu0 0
      %591 = vperm.xlu0 %590, %v588
      %v592 = vpop.permute.xlu0 %591
      %v594 = vmul.f32 %v585, %v592
      %v595 = vmul.f32 %v586, %v592
      %v596 = vadd.f32 %v563, %v594
      %v597 = vadd.f32 %v564, %v595
      %v598 = vld [vmem:[%s298] sm:$0xf]
      %600 = vset.pattern.permute.xlu0 0
      %601 = vperm.xlu0 %600, %v598
      %v602 = vpop.permute.xlu0 %601
      %v604 = vmul.f32 %v596, %v602
      %v605 = vmul.f32 %v597, %v602
      %v606 = vld [vmem:[%s302] sm:$0xf]
      %608 = vset.pattern.permute.xlu0 0
      %609 = vperm.xlu0 %608, %v606
      %v610 = vpop.permute.xlu0 %609
      %v612 = vadd.f32 %v604, %v610
      %v613 = vadd.f32 %v605, %v610
      %v614 = vmax.f32 %v612, 0.0
      %v615 = vmax.f32 %v613, 0.0
      %v618 = vcombine.low %v614, %v615
      %620 = vst [vmem:[%s311] sm:$0xff] %v618
      %p621 = scmp.lt.s32.totalorder %s20, 1
      %s622 = scalar_select %p621, %s20, 1
      %p623 = scmp.lt.s32.totalorder %s21, 0
      %s624 = scalar_select %p623, %s21, 0
      %s625 = smul.addr %s624, 2
      %s626 = smul.addr %s622, 2
      %s627 = sadd.s32 %s625, %s626
      %s628 = smul.addr %s627, 4
      %s629 = scalar_lea.vmem %s5, %s628
      // Predicated region
      $region41: #{basic_sep_conv.3} parent=39 // pred_check
        %p630 = pneg %p175
      $region42: #{basic_sep_conv.3} parent=39 // pred_check_branch
        %632 = sbr.rel (%p630) target = $region44
      $region43: #{basic_sep_conv.3} parent=39 // pred_region
        _
      $region44: #{basic_sep_conv.3} parent=39 // pred_fallthru
        _
    $region40: #{basic_sep_conv.3} parent=5 // pred_fallthru
      _
    %p633 = scmp.le.s32.totalorder 2, %s11
    // Predicated region
    $region45: #{basic_sep_conv.3} parent=5 // pred_check
      %p634 = pneg %p633
    $region46: #{basic_sep_conv.3} parent=5 // pred_check_branch
      %636 = sbr.rel (%p634) target = $region48
    $region47: #{basic_sep_conv.3} parent=5 // pred_region
      %s637 = ssub.s32 %s11, 2
      // Predicated region
      $region49: #{basic_sep_conv.3} parent=47 // pred_check
        %p638 = pneg %p181
      $region50: #{basic_sep_conv.3} parent=47 // pred_check_branch
        %640 = sbr.rel (%p638) target = $region52
      $region51: #{basic_sep_conv.3} parent=47 // pred_region
        %p641 = scmp.lt.s32.totalorder %s22, 1
        %s642 = scalar_select %p641, %s22, 1
        %p643 = scmp.lt.s32.totalorder %s23, 0
        %s644 = scalar_select %p643, %s23, 0
        %s645 = smul.addr %s644, 2
        %s646 = smul.addr %s642, 2
        %s647 = sadd.s32 %s645, %s646
        %s648 = smul.addr %s647, 4
        %s649 = scalar_lea.vmem %s5, %s648
      $region52: #{basic_sep_conv.3} parent=47 // pred_fallthru
        _
    $region48: #{basic_sep_conv.3} parent=5 // pred_fallthru
      _
  $region6: #{basic_sep_conv.3} parent=0 // loop_footer
    %s15 = sadd.s32 1, %s11
  $region7: #{basic_sep_conv.3} parent=0 // loop_footer_branch
    %10 = sbr.rel target = $region3
  $region8: #{basic_sep_conv.3} parent=0 // loop_exit
    _

</llo_original>
